<compile_context>
chip_gen: v7x
topology: tpu7x:2x2x1
jax: 0.10.0
libtpu: 0.0.40
codegen_flags: <defaults>
</compile_context>

<pallas_src>
import functools

import numpy as np
import jax
import jax.numpy as jnp
from jax.experimental import pallas as pl
from jax.experimental.pallas import tpu as pltpu

SCALES = 3
WEIGHTS = tuple(1.0 / (2.0 ** s) for s in range(SCALES))  # torch: [1/2**s for s in range(scales)]

_LANE = 128
_SUBLANE = 8
_OUT_TILE = (_SUBLANE, _LANE)            # lane-dense per-block partial-sum tile
_FLAT_LIMIT = 1024                        # max flattened row-group length (caps pooling-matrix size)
_BLOCK_BUDGET_BYTES = 2 * 1024 * 1024     # per input block; 2 inputs x 2 buffers = 8 MiB on every chip


def _cdiv(a, b):
    return (a + b - 1) // b


def _round_up(x, m):
    return ((x + m - 1) // m) * m


def _pool_flat_matrix(h, w, k):
    """(h*w, (h//k)*(w//k)) matrix P with flat_plane @ P == AvgPool2d(k,k)(plane) flattened."""
    hw = h * w
    out_w = w // k
    m = np.zeros((hw, (h // k) * out_w), dtype=np.float32)
    idx = np.arange(hw)
    r, c = idx // w, idx % w
    m[idx, (r // k) * out_w + (c // k)] = 1.0 / float(k * k)
    return m


def _ms_loss_kernel(o_ref, t_ref, m_ref, partial_ref, *, c0, n_valid_rows, p_tile, ragged):
    # d = o - t for this block of (row-group) rows; pooling is linear so only d is pooled.
    d = o_ref[...].astype(jnp.float32) - t_ref[...].astype(jnp.float32)
    if ragged:
        # Partial last block: rows past n_valid_rows hold unspecified data -> zero them.
        valid = n_valid_rows - pl.program_id(0) * p_tile
        rows = jax.lax.broadcasted_iota(jnp.int32, d.shape, 0)
        d = jnp.where(rows < valid, d, 0.0)
    # Scale 0 term (coefficient already includes 1/element_count and 1/(8*128)).
    acc = jnp.sum(jnp.abs(d)) * c0
    # Scales 1..S-1 in one fused lane-dense matmul; per-scale coefficients are folded into the
    # (positive) matrix columns, zero-padded columns contribute nothing.
    pooled = jnp.dot(d, m_ref[...], preferred_element_type=jnp.float32,
                     precision=jax.lax.Precision.HIGHEST)
    acc = acc + jnp.sum(jnp.abs(pooled))
    # Dense partial-sum tile for this block; wrapper reduces with a plain jnp.sum.
    partial_ref[...] = jnp.broadcast_to(acc, partial_ref.shape)


def multi_scale_loss(output, target, scales=SCALES):
    """output, target: NCHW arrays. Returns scalar float32 loss."""
    assert output.shape == target.shape and output.ndim == 4
    B, C, H, W = output.shape
    k_max = 2 ** (scales - 1)
    assert H % k_max == 0 and W % k_max == 0, "spatial dims must be divisible by 2**(scales-1)"

    # Row-group size: largest multiple of k_max dividing H with rg*W <= _FLAT_LIMIT.  Coarsest
    # pooling windows (k_max x k_max) never cross a row-group, so the loss decomposes exactly
    # over row-groups and the reshape below is contiguous (free).
    rg = k_max
    cand = k_max
    while cand <= H:
        if H % cand == 0 and cand * W <= _FLAT_LIMIT:
            rg = cand
        cand += k_max
    hw_flat = rg * W
    n_rows = B * C * (H // rg)

    o2 = output.reshape(n_rows, hw_flat)   # contiguous reshape: no data movement
    t2 = target.reshape(n_rows, hw_flat)

    # Static coefficients: weight_s / (#elements of the pooled tensor at scale s) / (8*128 output
    # tile copies).  Every runtime divide is folded away.
    inv_tile = 1.0 / float(_SUBLANE * _LANE)
    coeffs = [WEIGHTS[s] / float(B * C * (H >> s) * (W >> s)) * inv_tile for s in range(scales)]

    # Fused, coefficient-folded pooling matrix for one (rg, W) row-group, padded to a multiple of
    # 128 lanes with zero columns (lane-dense, contribute nothing to sum(|.|)).
    blocks = [coeffs[s] * _pool_flat_matrix(rg, W, 2 ** s) for s in range(1, scales)]
    m = np.concatenate(blocks, axis=1)
    n_cols = _round_up(max(m.shape[1], _LANE), _LANE)
    if n_cols != m.shape[1]:
        m = np.concatenate([m, np.zeros((hw_flat, n_cols - m.shape[1]), np.float32)], axis=1)
    m_fused = jnp.asarray(m, dtype=jnp.float32)

    # Plane-tile sizing: ~2 MiB per input block (2 inputs x 2 buffers = 8 MiB) keeps the whole
    # footprint (+<=3 MiB matrix/temps) under every chip's default scoped VMEM (16 MiB on v5e,
    # 32 MiB on v6e/v7x) while hitting ~95% of the HBM streaming roofline.  Cap at half the rows
    # so the grid has >=2 blocks when the layout allows (v7x: both TensorCores work).
    itemsize = jnp.dtype(output.dtype).itemsize
    max_tile = max(_SUBLANE, (_BLOCK_BUDGET_BYTES // (hw_flat * itemsize)) // _SUBLANE * _SUBLANE)
    p_tile = min(max_tile, _round_up(_cdiv(n_rows, 2), _SUBLANE))
    if p_tile >= n_rows:
        p_tile = n_rows                    # single full-extent block: no tail, no masking
    num_blocks = _cdiv(n_rows, p_tile)
    ragged = (num_blocks * p_tile != n_rows)

    kernel = functools.partial(_ms_loss_kernel, c0=coeffs[0], n_valid_rows=n_rows,
                               p_tile=p_tile, ragged=ragged)

    def _run(mat_spec):
        return pl.pallas_call(
            kernel,
            out_shape=jax.ShapeDtypeStruct((num_blocks,) + _OUT_TILE, jnp.float32),
            grid=(num_blocks,),
            in_specs=[
                pl.BlockSpec((p_tile, hw_flat), lambda i: (i, 0)),
                pl.BlockSpec((p_tile, hw_flat), lambda i: (i, 0)),
                mat_spec,
            ],
            out_specs=pl.BlockSpec((1,) + _OUT_TILE, lambda i: (i, 0, 0)),
            compiler_params=pltpu.CompilerParams(dimension_semantics=("parallel",)),
        )(o2, t2, m_fused)

    try:
        # Constant matrix: constant index_map (never re-DMA'd) + single buffer (no wasted VMEM).
        partials = _run(pl.BlockSpec(m_fused.shape, lambda i: (0, 0), pipeline_mode=pl.Buffered(1)))
    except Exception:
        # Fallback if this JAX build does not support pipeline_mode on the outer pipeline.
        partials = _run(pl.BlockSpec(m_fused.shape, lambda i: (0, 0)))

    # Dense reduction: each block wrote acc/1024 to a full (8,128) tile.
    return jnp.sum(partials)


def _reference_loss(output, target, scales=SCALES):
    # Pure-JAX reference mirroring the PyTorch module (L1 norm, aux_loss_fn=None).
    B, C, H, W = output.shape
    loss = jnp.float32(0.0)
    for s in range(scales):
        k = 2 ** s
        oo = output.reshape(B, C, H // k, k, W // k, k).mean(axis=(3, 5))
        tt = target.reshape(B, C, H // k, k, W // k, k).mean(axis=(3, 5))
        loss = loss + jnp.float32(WEIGHTS[s]) * jnp.mean(jnp.abs(oo - tt))
    return loss


if __name__ == "__main__":
    key = jax.random.PRNGKey(0)
    cases = [
        (2, 4, 16, 16),   # primary small shape: single full-extent block
        (3, 5, 16, 16),   # 15 planes: multi-block grid with ragged last block + in-kernel masking
        (2, 2, 64, 64),   # larger spatial dims: row-group split (rg < H), 2 parallel blocks
    ]
    for idx, (B, C, H, W) in enumerate(cases):
        k1, k2 = jax.random.split(jax.random.fold_in(key, idx))
        output = jax.random.normal(k1, (B, C, H, W), dtype=jnp.float32)
        target = jax.random.normal(k2, (B, C, H, W), dtype=jnp.float32)

        loss = jax.block_until_ready(multi_scale_loss(output, target))
        ref = _reference_loss(output, target)
        assert jnp.allclose(loss, ref, rtol=1e-4, atol=1e-5), (idx, float(loss), float(ref))

    print("KERNEL_OK")
</pallas_src>

<mosaic_0001>
module attributes {stable_mosaic.version = 11 : i64} {
  func.func @_ms_loss_kernel(%arg0: i32, %arg1: memref<8x256xf32, #tpu.memory_space<vmem>>, %arg2: memref<8x256xf32, #tpu.memory_space<vmem>>, %arg3: memref<256x128xf32, #tpu.memory_space<vmem>>, %arg4: memref<1x8x128xf32, #tpu.memory_space<vmem>>) attributes {dimension_semantics = [#tpu.dimension_semantics<parallel>], iteration_bounds = array<i64: 1>, scalar_prefetch = 0 : i64, scratch_operands = 0 : i64, tpu.core_type = #tpu.core_type<tc>, window_params = [{transform_indices = @transform_0, window_bounds = array<i64: 8, 256>}, {transform_indices = @transform_1, window_bounds = array<i64: 8, 256>}, {pipeline_mode = #tpu.pipeline_mode<synchronous>, transform_indices = @transform_2, window_bounds = array<i64: 256, 128>}, {transform_indices = @transform_3, window_bounds = array<i64: 1, 8, 128>}]} {
    %c0 = arith.constant 0 : index
    %c0_0 = arith.constant 0 : index
    %0 = vector.load %arg1[%c0, %c0_0] : memref<8x256xf32, #tpu.memory_space<vmem>>, vector<8x256xf32>
    %c0_1 = arith.constant 0 : index
    %c0_2 = arith.constant 0 : index
    %1 = vector.load %arg2[%c0_1, %c0_2] : memref<8x256xf32, #tpu.memory_space<vmem>>, vector<8x256xf32>
    %2 = arith.subf %0, %1 : vector<8x256xf32>
    %3 = math.absf %2 : vector<8x256xf32>
    %4 = vector.shape_cast %3 : vector<8x256xf32> to vector<1x8x256xf32>
    %cst = arith.constant dense<0.000000e+00> : vector<1xf32>
    %5 = vector.multi_reduction <add>, %4, %cst [1, 2] : vector<1x8x256xf32> to vector<1xf32>
    %6 = vector.shape_cast %5 : vector<1xf32> to vector<1x1x1xf32>
    %7 = vector.extract %6[0, 0, 0] : f32 from vector<1x1x1xf32>
    %cst_3 = arith.constant 4.76837158E-7 : f32
    %8 = arith.mulf %7, %cst_3 : f32
    %c0_4 = arith.constant 0 : index
    %c0_5 = arith.constant 0 : index
    %9 = vector.load %arg3[%c0_4, %c0_5] : memref<256x128xf32, #tpu.memory_space<vmem>>, vector<256x128xf32>
    %cst_6 = arith.constant dense<0.000000e+00> : vector<8x128xf32>
    %10 = tpu.matmul %2, %9, %cst_6 {dimension_numbers = #tpu.dot_dimension_numbers<[1], [0], [0], [1], [0, 0, 1, 1], [], []>, precision = #tpu.contract_precision<fp32>} : vector<8x256xf32>, vector<256x128xf32>, vector<8x128xf32> -> vector<8x128xf32>
    %11 = math.absf %10 : vector<8x128xf32>
    %12 = vector.shape_cast %11 : vector<8x128xf32> to vector<1x8x128xf32>
    %cst_7 = arith.constant dense<0.000000e+00> : vector<1xf32>
    %13 = vector.multi_reduction <add>, %12, %cst_7 [1, 2] : vector<1x8x128xf32> to vector<1xf32>
    %14 = vector.shape_cast %13 : vector<1xf32> to vector<1x1x1xf32>
    %15 = vector.extract %14[0, 0, 0] : f32 from vector<1x1x1xf32>
    %16 = arith.addf %8, %15 : f32
    %17 = vector.broadcast %16 : f32 to vector<1x8x128xf32>
    %c0_8 = arith.constant 0 : index
    %c0_9 = arith.constant 0 : index
    %c0_10 = arith.constant 0 : index
    %18 = vector.load %arg4[%c0_8, %c0_9, %c0_10] : memref<1x8x128xf32, #tpu.memory_space<vmem>>, vector<1x8x128xf32>
    tpu.vector_store %arg4[%c0_8, %c0_9, %c0_10], %17 {strides = array<i32>} : memref<1x8x128xf32, #tpu.memory_space<vmem>>, vector<1x8x128xf32>,
    return
  }
  func.func @transform_0(%arg0: i32) -> (i32, i32) {
    %c0_i32 = arith.constant 0 : i32
    %c0_i32_0 = arith.constant 0 : i32
    return %arg0, %c0_i32 : i32, i32
  }
  func.func @transform_1(%arg0: i32) -> (i32, i32) {
    %c0_i32 = arith.constant 0 : i32
    %c0_i32_0 = arith.constant 0 : i32
    return %arg0, %c0_i32 : i32, i32
  }
  func.func @transform_2(%arg0: i32) -> (i32, i32) {
    %c0_i32 = arith.constant 0 : i32
    %c0_i32_0 = arith.constant 0 : i32
    %c0_i32_1 = arith.constant 0 : i32
    return %c0_i32, %c0_i32_0 : i32, i32
  }
  func.func @transform_3(%arg0: i32) -> (i32, i32, i32) {
    %c0_i32 = arith.constant 0 : i32
    %c0_i32_0 = arith.constant 0 : i32
    %c0_i32_1 = arith.constant 0 : i32
    return %arg0, %c0_i32, %c0_i32_0 : i32, i32, i32
  }
}

module attributes {stable_mosaic.version = 11 : i64} {
  func.func @_ms_loss_kernel(%arg0: i32, %arg1: memref<8x256xf32, #tpu.memory_space<vmem>>, %arg2: memref<8x256xf32, #tpu.memory_space<vmem>>, %arg3: memref<256x128xf32, #tpu.memory_space<vmem>>, %arg4: memref<1x8x128xf32, #tpu.memory_space<vmem>>) attributes {dimension_semantics = [#tpu.dimension_semantics<parallel>], iteration_bounds = array<i64: 1>, scalar_prefetch = 0 : i64, scratch_operands = 0 : i64, tpu.core_type = #tpu.core_type<tc>, window_params = [{transform_indices = @transform_0, window_bounds = array<i64: 8, 256>}, {transform_indices = @transform_1, window_bounds = array<i64: 8, 256>}, {pipeline_mode = #tpu.pipeline_mode<synchronous>, transform_indices = @transform_2, window_bounds = array<i64: 256, 128>}, {transform_indices = @transform_3, window_bounds = array<i64: 1, 8, 128>}]} {
    %c0 = arith.constant 0 : index
    %c0_0 = arith.constant 0 : index
    %0 = vector.load %arg1[%c0, %c0_0] : memref<8x256xf32, #tpu.memory_space<vmem>>, vector<8x256xf32>
    %c0_1 = arith.constant 0 : index
    %c0_2 = arith.constant 0 : index
    %1 = vector.load %arg2[%c0_1, %c0_2] : memref<8x256xf32, #tpu.memory_space<vmem>>, vector<8x256xf32>
    %2 = arith.subf %0, %1 : vector<8x256xf32>
    %3 = math.absf %2 : vector<8x256xf32>
    %4 = vector.shape_cast %3 : vector<8x256xf32> to vector<1x8x256xf32>
    %cst = arith.constant dense<0.000000e+00> : vector<1xf32>
    %5 = vector.multi_reduction <add>, %4, %cst [1, 2] : vector<1x8x256xf32> to vector<1xf32>
    %6 = vector.shape_cast %5 : vector<1xf32> to vector<1x1x1xf32>
    %7 = vector.extract %6[0, 0, 0] : f32 from vector<1x1x1xf32>
    %cst_3 = arith.constant 4.76837158E-7 : f32
    %8 = arith.mulf %7, %cst_3 : f32
    %c0_4 = arith.constant 0 : index
    %c0_5 = arith.constant 0 : index
    %9 = vector.load %arg3[%c0_4, %c0_5] : memref<256x128xf32, #tpu.memory_space<vmem>>, vector<256x128xf32>
    %cst_6 = arith.constant dense<0.000000e+00> : vector<8x128xf32>
    %10 = tpu.matmul %2, %9, %cst_6 {dimension_numbers = #tpu.dot_dimension_numbers<[1], [0], [0], [1], [0, 0, 1, 1], [], []>, precision = #tpu.contract_precision<fp32>} : vector<8x256xf32>, vector<256x128xf32>, vector<8x128xf32> -> vector<8x128xf32>
    %11 = math.absf %10 : vector<8x128xf32>
    %12 = vector.shape_cast %11 : vector<8x128xf32> to vector<1x8x128xf32>
    %cst_7 = arith.constant dense<0.000000e+00> : vector<1xf32>
    %13 = vector.multi_reduction <add>, %12, %cst_7 [1, 2] : vector<1x8x128xf32> to vector<1xf32>
    %14 = vector.shape_cast %13 : vector<1xf32> to vector<1x1x1xf32>
    %15 = vector.extract %14[0, 0, 0] : f32 from vector<1x1x1xf32>
    %16 = arith.addf %8, %15 : f32
    %17 = vector.broadcast %16 : f32 to vector<1x8x128xf32>
    %c0_8 = arith.constant 0 : index
    %c0_9 = arith.constant 0 : index
    %c0_10 = arith.constant 0 : index
    %18 = vector.load %arg4[%c0_8, %c0_9, %c0_10] : memref<1x8x128xf32, #tpu.memory_space<vmem>>, vector<1x8x128xf32>
    tpu.vector_store %arg4[%c0_8, %c0_9, %c0_10], %17 {strides = array<i32>} : memref<1x8x128xf32, #tpu.memory_space<vmem>>, vector<1x8x128xf32>,
    return
  }
  func.func @transform_0(%arg0: i32) -> (i32, i32) {
    %c0_i32 = arith.constant 0 : i32
    %c0_i32_0 = arith.constant 0 : i32
    return %arg0, %c0_i32 : i32, i32
  }
  func.func @transform_1(%arg0: i32) -> (i32, i32) {
    %c0_i32 = arith.constant 0 : i32
    %c0_i32_0 = arith.constant 0 : i32
    return %arg0, %c0_i32 : i32, i32
  }
  func.func @transform_2(%arg0: i32) -> (i32, i32) {
    %c0_i32 = arith.constant 0 : i32
    %c0_i32_0 = arith.constant 0 : i32
    %c0_i32_1 = arith.constant 0 : i32
    return %c0_i32, %c0_i32_0 : i32, i32
  }
  func.func @transform_3(%arg0: i32) -> (i32, i32, i32) {
    %c0_i32 = arith.constant 0 : i32
    %c0_i32_0 = arith.constant 0 : i32
    %c0_i32_1 = arith.constant 0 : i32
    return %arg0, %c0_i32, %c0_i32_0 : i32, i32, i32
  }
}

</mosaic_0001>

<llo_original>
// kernel: tpu_custom_call.1
$region0: #{tpu_custom_call.1}
  #allocation0 [shape = 'u32[]', space=smem, size = 0x4, offset = 0x4, fixed_abs, tag = 'smem constant byte address 0x4 - core index']
  #allocation1 [shape = 'u32[144,128]{1,0:T(1,128)}', space=vmem, size = 0x12000, scoped, tag = 'internal scratch']
  %s0 = inlined_call_operand.hbm [shape: f32[8,256], index: 0, kind: input, shape index: {}]
  %s1 = inlined_call_operand.hbm [shape: f32[8,256], index: 1, kind: input, shape index: {}]
  %s2 = inlined_call_operand.hbm [shape: f32[256,128], index: 2, kind: input, shape index: {}]
  %s3 = inlined_call_operand.hbm [shape: f32[1,8,128], index: 3, kind: output, shape index: {}]
  %s4 = sld [smem:[#allocation0]]
  $region34: #{tpu_custom_call.1} parent=0
    _
  %s6 = ssub.s32 1, %s4
  %s7 = scalar_select 0, %s6, %s4
  $region1: #{tpu_custom_call.1} parent=0
    #allocation2 [shape = 'u8[8192]{0}', space=vmem, size = 0x2000, scoped, tag = 'input window, operand 0, single buffered']
    #allocation3 [shape = 's32[1]{0}', space=sflag, size = 0x4, scoped, tag = 'scoped memory for tpu_custom_call.1']
    #allocation4 [shape = 's32[1]{0}', space=sflag, size = 0x4, scoped, tag = 'scoped memory for tpu_custom_call.1']
    #allocation5 [shape = 'u8[8192]{0}', space=vmem, size = 0x2000, scoped, tag = 'input window, operand 1, single buffered']
    #allocation6 [shape = 's32[1]{0}', space=sflag, size = 0x4, scoped, tag = 'scoped memory for tpu_custom_call.1']
    #allocation7 [shape = 'u8[131072]{0}', space=vmem, size = 0x20000, scoped, tag = 'input window, operand 2, single buffered']
    #allocation8 [shape = 'u8[4096]{0}', space=vmem, size = 0x1000, scoped, tag = 'output window, operand 0, single buffered']
    %8 = vsyncpa [#allocation3], 0
    %9 = vsyncpa [#allocation6], 0
    %10 = vsyncpa [#allocation4], 0
    // Predicated region
    $region2: #{tpu_custom_call.1} parent=1 // pred_check
      _
    $region3: #{tpu_custom_call.1} parent=1 // pred_check_branch
      %12 = sbr.rel (0) target = $region5
    $region4: #{tpu_custom_call.1} parent=1 // pred_region
      %s14 = ssub.s32 256, 256
      %15 = vsyncadd [#allocation3], %s14
      %s17 = sshll.u32 [#allocation2], 4
      %s18 = int_to_ptr.vmem [resolvable:$true] %s17
      %20 = dma.hbm_to_vmem [thread:$0]  %s0, 256, %s18, [#allocation3]
    $region5: #{tpu_custom_call.1} parent=1 // pred_fallthru
      _
    // Predicated region
    $region6: #{tpu_custom_call.1} parent=1 // pred_check
      _
    $region7: #{tpu_custom_call.1} parent=1 // pred_check_branch
      %22 = sbr.rel (0) target = $region9
    $region8: #{tpu_custom_call.1} parent=1 // pred_region
      %s24 = ssub.s32 256, 256
      %25 = vsyncadd [#allocation6], %s24
      %s27 = sshll.u32 [#allocation5], 4
      %s28 = int_to_ptr.vmem [resolvable:$true] %s27
      %30 = dma.hbm_to_vmem [thread:$0]  %s1, 256, %s28, [#allocation6]
    $region9: #{tpu_custom_call.1} parent=1 // pred_fallthru
      _
    // Predicated region
    $region10: #{tpu_custom_call.1} parent=1 // pred_check
      _
    $region11: #{tpu_custom_call.1} parent=1 // pred_check_branch
      %32 = sbr.rel (0) target = $region13
    $region12: #{tpu_custom_call.1} parent=1 // pred_region
      %s34 = ssub.s32 4096, 4096
      %35 = vsyncadd [#allocation6], %s34
      %s36 = sshll.u32 [#allocation7], 4
      %s37 = int_to_ptr.vmem [resolvable:$true] %s36
      %42 = dma.hbm_to_vmem [thread:$0]  %s2, 4096, %s37, [#allocation6], 128, 128, 8
    $region13: #{tpu_custom_call.1} parent=1 // pred_fallthru
      _
    // Predicated region
    $region14: #{tpu_custom_call.1} parent=1 // pred_check
      _
    $region15: #{tpu_custom_call.1} parent=1 // pred_check_branch
      %44 = sbr.rel (0) target = $region17
    $region16: #{tpu_custom_call.1} parent=1 // pred_region
      %45 = dma.done [#allocation3], 256
    $region17: #{tpu_custom_call.1} parent=1 // pred_fallthru
      _
    // Predicated region
    $region18: #{tpu_custom_call.1} parent=1 // pred_check
      _
    $region19: #{tpu_custom_call.1} parent=1 // pred_check_branch
      %47 = sbr.rel (0) target = $region21
    $region20: #{tpu_custom_call.1} parent=1 // pred_region
      %48 = dma.done [#allocation6], 256
    $region21: #{tpu_custom_call.1} parent=1 // pred_fallthru
      _
    // Predicated region
    $region22: #{tpu_custom_call.1} parent=1 // pred_check
      _
    $region23: #{tpu_custom_call.1} parent=1 // pred_check_branch
      %50 = sbr.rel (0) target = $region25
    $region24: #{tpu_custom_call.1} parent=1 // pred_region
      %51 = dma.done [#allocation6], 4096
    $region25: #{tpu_custom_call.1} parent=1 // pred_fallthru
      _
    %v52 = vld [vmem:[#allocation2] sm:$0xff]
    %v53 = vld [vmem:[#allocation2 + $0x8] sm:$0xff]
    %v54 = vld [vmem:[#allocation5] sm:$0xff]
    %v55 = vld [vmem:[#allocation5 + $0x8] sm:$0xff]
    %v56 = vsub.f32 %v52, %v54
    %v57 = vsub.f32 %v53, %v55
    %v58 = vand.u32 2147483647, %v56
    %v59 = vand.u32 2147483647, %v57
    %v60 = vadd.f32 %v58, %v59
    %61 = vadd.xlane.f32.xlu0 %v60
    %v62 = vpop.xlane.xlu0 %61
    %v63 = vrot.slane %v62, 4
    %v64 = vadd.f32 %v62, %v63
    %v65 = vrot.slane %v64, 2
    %v66 = vadd.f32 %v64, %v65
    %v67 = vrot.slane %v66, 1
    %v68 = vadd.f32 %v66, %v67
    %s69 = vtos %v68
    %s70 = smul.f32 %s69, 4.7683716e-07
    %v71 = vld [vmem:[#allocation7] sm:$0xff]
    %v72 = vld [vmem:[#allocation7 + $0x8] sm:$0xff]
    %v73 = vld [vmem:[#allocation7 + $0x10] sm:$0xff]
    %v74 = vld [vmem:[#allocation7 + $0x18] sm:$0xff]
    %v75 = vld [vmem:[#allocation7 + $0x20] sm:$0xff]
    %v76 = vld [vmem:[#allocation7 + $0x28] sm:$0xff]
    %v77 = vld [vmem:[#allocation7 + $0x30] sm:$0xff]
    %v78 = vld [vmem:[#allocation7 + $0x38] sm:$0xff]
    %v79 = vld [vmem:[#allocation7 + $0x40] sm:$0xff]
    %v80 = vld [vmem:[#allocation7 + $0x48] sm:$0xff]
    %v81 = vld [vmem:[#allocation7 + $0x50] sm:$0xff]
    %v82 = vld [vmem:[#allocation7 + $0x58] sm:$0xff]
    %v83 = vld [vmem:[#allocation7 + $0x60] sm:$0xff]
    %v84 = vld [vmem:[#allocation7 + $0x68] sm:$0xff]
    %v85 = vld [vmem:[#allocation7 + $0x70] sm:$0xff]
    %v86 = vld [vmem:[#allocation7 + $0x78] sm:$0xff]
    %v87 = vld [vmem:[#allocation7 + $0x80] sm:$0xff]
    %v88 = vld [vmem:[#allocation7 + $0x88] sm:$0xff]
    %v89 = vld [vmem:[#allocation7 + $0x90] sm:$0xff]
    %v90 = vld [vmem:[#allocation7 + $0x98] sm:$0xff]
    %v91 = vld [vmem:[#allocation7 + $0xa0] sm:$0xff]
    %v92 = vld [vmem:[#allocation7 + $0xa8] sm:$0xff]
    %v93 = vld [vmem:[#allocation7 + $0xb0] sm:$0xff]
    %v94 = vld [vmem:[#allocation7 + $0xb8] sm:$0xff]
    %v95 = vld [vmem:[#allocation7 + $0xc0] sm:$0xff]
    %v96 = vld [vmem:[#allocation7 + $0xc8] sm:$0xff]
    %v97 = vld [vmem:[#allocation7 + $0xd0] sm:$0xff]
    %v98 = vld [vmem:[#allocation7 + $0xd8] sm:$0xff]
    %v99 = vld [vmem:[#allocation7 + $0xe0] sm:$0xff]
    %v100 = vld [vmem:[#allocation7 + $0xe8] sm:$0xff]
    %v101 = vld [vmem:[#allocation7 + $0xf0] sm:$0xff]
    %v102 = vld [vmem:[#allocation7 + $0xf8] sm:$0xff]
    %103 = vmatprep.subr.mxu0 0.0
    %v104 = vand.u32 %v71, 4294901760
    %105 = vmatpush1.msra.mxu0 %v104
    %106 = vmatprep.subr.mxu0 0.0
    %v107 = vand.u32 %v72, 4294901760
    %108 = vmatpush1.msra.mxu0 %v107
    %109 = vmatprep.subr.mxu0 0.0
    %v110 = vand.u32 %v73, 4294901760
    %111 = vmatpush1.msra.mxu0 %v110
    %112 = vmatprep.subr.mxu0 0.0
    %v113 = vand.u32 %v74, 4294901760
    %114 = vmatpush1.msra.mxu0 %v113
    %115 = vmatprep.subr.mxu0 0.0
    %v116 = vand.u32 %v75, 4294901760
    %117 = vmatpush1.msra.mxu0 %v116
    %118 = vmatprep.subr.mxu0 0.0
    %v119 = vand.u32 %v76, 4294901760
    %120 = vmatpush1.msra.mxu0 %v119
    %121 = vmatprep.subr.mxu0 0.0
    %v122 = vand.u32 %v77, 4294901760
    %123 = vmatpush1.msra.mxu0 %v122
    %124 = vmatprep.subr.mxu0 0.0
    %v125 = vand.u32 %v78, 4294901760
    %126 = vmatpush1.msra.mxu0 %v125
    %127 = vmatprep.subr.mxu0 0.0
    %v128 = vand.u32 %v79, 4294901760
    %129 = vmatpush1.msra.mxu0 %v128
    %130 = vmatprep.subr.mxu0 0.0
    %v131 = vand.u32 %v80, 4294901760
    %132 = vmatpush1.msra.mxu0 %v131
    %133 = vmatprep.subr.mxu0 0.0
    %v134 = vand.u32 %v81, 4294901760
    %135 = vmatpush1.msra.mxu0 %v134
    %136 = vmatprep.subr.mxu0 0.0
    %v137 = vand.u32 %v82, 4294901760
    %138 = vmatpush1.msra.mxu0 %v137
    %139 = vmatprep.subr.mxu0 0.0
    %v140 = vand.u32 %v83, 4294901760
    %141 = vmatpush1.msra.mxu0 %v140
    %142 = vmatprep.subr.mxu0 0.0
    %v143 = vand.u32 %v84, 4294901760
    %144 = vmatpush1.msra.mxu0 %v143
    %145 = vmatprep.subr.mxu0 0.0
    %v146 = vand.u32 %v85, 4294901760
    %147 = vmatpush1.msra.mxu0 %v146
    %148 = vmatprep.subr.mxu0 0.0
    %v149 = vand.u32 %v86, 4294901760
    %150 = vmatpush1.msra.mxu0 %v149
    %151 = vmatprep.subr.mxu0 0.0
    %v152 = vand.u32 %v87, 4294901760
    %153 = vmatpush1.msra.mxu0 %v152
    %154 = vmatprep.subr.mxu0 0.0
    %v155 = vand.u32 %v88, 4294901760
    %156 = vmatpush1.msra.mxu0 %v155
    %157 = vmatprep.subr.mxu0 0.0
    %v158 = vand.u32 %v89, 4294901760
    %159 = vmatpush1.msra.mxu0 %v158
    %160 = vmatprep.subr.mxu0 0.0
    %v161 = vand.u32 %v90, 4294901760
    %162 = vmatpush1.msra.mxu0 %v161
    %163 = vmatprep.subr.mxu0 0.0
    %v164 = vand.u32 %v91, 4294901760
    %165 = vmatpush1.msra.mxu0 %v164
    %166 = vmatprep.subr.mxu0 0.0
    %v167 = vand.u32 %v92, 4294901760
    %168 = vmatpush1.msra.mxu0 %v167
    %169 = vmatprep.subr.mxu0 0.0
    %v170 = vand.u32 %v93, 4294901760
    %171 = vmatpush1.msra.mxu0 %v170
    %172 = vmatprep.subr.mxu0 0.0
    %v173 = vand.u32 %v94, 4294901760
    %174 = vmatpush1.msra.mxu0 %v173
    %175 = vmatprep.subr.mxu0 0.0
    %v176 = vand.u32 %v95, 4294901760
    %177 = vmatpush1.msra.mxu0 %v176
    %178 = vmatprep.subr.mxu0 0.0
    %v179 = vand.u32 %v96, 4294901760
    %180 = vmatpush1.msra.mxu0 %v179
    %181 = vmatprep.subr.mxu0 0.0
    %v182 = vand.u32 %v97, 4294901760
    %183 = vmatpush1.msra.mxu0 %v182
    %184 = vmatprep.subr.mxu0 0.0
    %v185 = vand.u32 %v98, 4294901760
    %186 = vmatpush1.msra.mxu0 %v185
    %187 = vmatprep.subr.mxu0 0.0
    %v188 = vand.u32 %v99, 4294901760
    %189 = vmatpush1.msra.mxu0 %v188
    %190 = vmatprep.subr.mxu0 0.0
    %v191 = vand.u32 %v100, 4294901760
    %192 = vmatpush1.msra.mxu0 %v191
    %193 = vmatprep.subr.mxu0 0.0
    %v194 = vand.u32 %v101, 4294901760
    %195 = vmatpush1.msra.mxu0 %v194
    %196 = vmatprep.subr.mxu0 0.0
    %v197 = vand.u32 %v102, 4294901760
    %198 = vmatpush1.msra.mxu0 %v197
    %v199 = vand.u32 %v57, 4294901760
    %v200 = vsub.f32 %v57, %v199
    %v201 = vand.u32 %v200, 4294901760
    %v202 = vsub.f32 %v200, %v201
    %v203 = vand.u32 %v202, 4294901760
    %204 = vmatprep.mubr.f32.mxu0 %v203
    %v205 = vand.u32 %v56, 4294901760
    %v206 = vsub.f32 %v56, %v205
    %v207 = vand.u32 %v206, 4294901760
    %v208 = vsub.f32 %v206, %v207
    %v209 = vand.u32 %v208, 4294901760
    %210 = vmatmul.mubr.f32.gmra.mrb[0].mxu0 %v209
    %v211 = vpop.f32.mrb[0].mxu0
    %v212 = vadd.f32 0.0, %v211
    %v213 = vpop.f32.mrb[0].mxu0
    %214 = vdwg.mxu0
    %215 = vmatprep.subr.mxu0 0.0
    %v216 = vand.u32 %v71, 4294901760
    %v217 = vsub.f32 %v71, %v216
    %v218 = vand.u32 %v217, 4294901760
    %v219 = vsub.f32 %v217, %v218
    %v220 = vand.u32 %v219, 4294901760
    %221 = vmatpush1.msra.mxu0 %v220
    %222 = vmatprep.subr.mxu0 0.0
    %v223 = vand.u32 %v72, 4294901760
    %v224 = vsub.f32 %v72, %v223
    %v225 = vand.u32 %v224, 4294901760
    %v226 = vsub.f32 %v224, %v225
    %v227 = vand.u32 %v226, 4294901760
    %228 = vmatpush1.msra.mxu0 %v227
    %229 = vmatprep.subr.mxu0 0.0
    %v230 = vand.u32 %v73, 4294901760
    %v231 = vsub.f32 %v73, %v230
    %v232 = vand.u32 %v231, 4294901760
    %v233 = vsub.f32 %v231, %v232
    %v234 = vand.u32 %v233, 4294901760
    %235 = vmatpush1.msra.mxu0 %v234
    %236 = vmatprep.subr.mxu0 0.0
    %v237 = vand.u32 %v74, 4294901760
    %v238 = vsub.f32 %v74, %v237
    %v239 = vand.u32 %v238, 4294901760
    %v240 = vsub.f32 %v238, %v239
    %v241 = vand.u32 %v240, 4294901760
    %242 = vmatpush1.msra.mxu0 %v241
    %243 = vmatprep.subr.mxu0 0.0
    %v244 = vand.u32 %v75, 4294901760
    %v245 = vsub.f32 %v75, %v244
    %v246 = vand.u32 %v245, 4294901760
    %v247 = vsub.f32 %v245, %v246
    %v248 = vand.u32 %v247, 4294901760
    %249 = vmatpush1.msra.mxu0 %v248
    %250 = vmatprep.subr.mxu0 0.0
    %v251 = vand.u32 %v76, 4294901760
    %v252 = vsub.f32 %v76, %v251
    %v253 = vand.u32 %v252, 4294901760
    %v254 = vsub.f32 %v252, %v253
    %v255 = vand.u32 %v254, 4294901760
    %256 = vmatpush1.msra.mxu0 %v255
    %257 = vmatprep.subr.mxu0 0.0
    %v258 = vand.u32 %v77, 4294901760
    %v259 = vsub.f32 %v77, %v258
    %v260 = vand.u32 %v259, 4294901760
    %v261 = vsub.f32 %v259, %v260
    %v262 = vand.u32 %v261, 4294901760
    %263 = vmatpush1.msra.mxu0 %v262
    %264 = vmatprep.subr.mxu0 0.0
    %v265 = vand.u32 %v78, 4294901760
    %v266 = vsub.f32 %v78, %v265
    %v267 = vand.u32 %v266, 4294901760
    %v268 = vsub.f32 %v266, %v267
    %v269 = vand.u32 %v268, 4294901760
    %270 = vmatpush1.msra.mxu0 %v269
    %271 = vmatprep.subr.mxu0 0.0
    %v272 = vand.u32 %v79, 4294901760
    %v273 = vsub.f32 %v79, %v272
    %v274 = vand.u32 %v273, 4294901760
    %v275 = vsub.f32 %v273, %v274
    %v276 = vand.u32 %v275, 4294901760
    %277 = vmatpush1.msra.mxu0 %v276
    %278 = vmatprep.subr.mxu0 0.0
    %v279 = vand.u32 %v80, 4294901760
    %v280 = vsub.f32 %v80, %v279
    %v281 = vand.u32 %v280, 4294901760
    %v282 = vsub.f32 %v280, %v281
    %v283 = vand.u32 %v282, 4294901760
    %284 = vmatpush1.msra.mxu0 %v283
    %285 = vmatprep.subr.mxu0 0.0
    %v286 = vand.u32 %v81, 4294901760
    %v287 = vsub.f32 %v81, %v286
    %v288 = vand.u32 %v287, 4294901760
    %v289 = vsub.f32 %v287, %v288
    %v290 = vand.u32 %v289, 4294901760
    %291 = vmatpush1.msra.mxu0 %v290
    %292 = vmatprep.subr.mxu0 0.0
    %v293 = vand.u32 %v82, 4294901760
    %v294 = vsub.f32 %v82, %v293
    %v295 = vand.u32 %v294, 4294901760
    %v296 = vsub.f32 %v294, %v295
    %v297 = vand.u32 %v296, 4294901760
    %298 = vmatpush1.msra.mxu0 %v297
    %299 = vmatprep.subr.mxu0 0.0
    %v300 = vand.u32 %v83, 4294901760
    %v301 = vsub.f32 %v83, %v300
    %v302 = vand.u32 %v301, 4294901760
    %v303 = vsub.f32 %v301, %v302
    %v304 = vand.u32 %v303, 4294901760
    %305 = vmatpush1.msra.mxu0 %v304
    %306 = vmatprep.subr.mxu0 0.0
    %v307 = vand.u32 %v84, 4294901760
    %v308 = vsub.f32 %v84, %v307
    %v309 = vand.u32 %v308, 4294901760
    %v310 = vsub.f32 %v308, %v309
    %v311 = vand.u32 %v310, 4294901760
    %312 = vmatpush1.msra.mxu0 %v311
    %313 = vmatprep.subr.mxu0 0.0
    %v314 = vand.u32 %v85, 4294901760
    %v315 = vsub.f32 %v85, %v314
    %v316 = vand.u32 %v315, 4294901760
    %v317 = vsub.f32 %v315, %v316
    %v318 = vand.u32 %v317, 4294901760
    %319 = vmatpush1.msra.mxu0 %v318
    %320 = vmatprep.subr.mxu0 0.0
    %v321 = vand.u32 %v86, 4294901760
    %v322 = vsub.f32 %v86, %v321
    %v323 = vand.u32 %v322, 4294901760
    %v324 = vsub.f32 %v322, %v323
    %v325 = vand.u32 %v324, 4294901760
    %326 = vmatpush1.msra.mxu0 %v325
    %327 = vmatprep.subr.mxu0 0.0
    %v328 = vand.u32 %v87, 4294901760
    %v329 = vsub.f32 %v87, %v328
    %v330 = vand.u32 %v329, 4294901760
    %v331 = vsub.f32 %v329, %v330
    %v332 = vand.u32 %v331, 4294901760
    %333 = vmatpush1.msra.mxu0 %v332
    %334 = vmatprep.subr.mxu0 0.0
    %v335 = vand.u32 %v88, 4294901760
    %v336 = vsub.f32 %v88, %v335
    %v337 = vand.u32 %v336, 4294901760
    %v338 = vsub.f32 %v336, %v337
    %v339 = vand.u32 %v338, 4294901760
    %340 = vmatpush1.msra.mxu0 %v339
    %341 = vmatprep.subr.mxu0 0.0
    %v342 = vand.u32 %v89, 4294901760
    %v343 = vsub.f32 %v89, %v342
    %v344 = vand.u32 %v343, 4294901760
    %v345 = vsub.f32 %v343, %v344
    %v346 = vand.u32 %v345, 4294901760
    %347 = vmatpush1.msra.mxu0 %v346
    %348 = vmatprep.subr.mxu0 0.0
    %v349 = vand.u32 %v90, 4294901760
    %v350 = vsub.f32 %v90, %v349
    %v351 = vand.u32 %v350, 4294901760
    %v352 = vsub.f32 %v350, %v351
    %v353 = vand.u32 %v352, 4294901760
    %354 = vmatpush1.msra.mxu0 %v353
    %355 = vmatprep.subr.mxu0 0.0
    %v356 = vand.u32 %v91, 4294901760
    %v357 = vsub.f32 %v91, %v356
    %v358 = vand.u32 %v357, 4294901760
    %v359 = vsub.f32 %v357, %v358
    %v360 = vand.u32 %v359, 4294901760
    %361 = vmatpush1.msra.mxu0 %v360
    %362 = vmatprep.subr.mxu0 0.0
    %v363 = vand.u32 %v92, 4294901760
    %v364 = vsub.f32 %v92, %v363
    %v365 = vand.u32 %v364, 4294901760
    %v366 = vsub.f32 %v364, %v365
    %v367 = vand.u32 %v366, 4294901760
    %368 = vmatpush1.msra.mxu0 %v367
    %369 = vmatprep.subr.mxu0 0.0
    %v370 = vand.u32 %v93, 4294901760
    %v371 = vsub.f32 %v93, %v370
    %v372 = vand.u32 %v371, 4294901760
    %v373 = vsub.f32 %v371, %v372
    %v374 = vand.u32 %v373, 4294901760
    %375 = vmatpush1.msra.mxu0 %v374
    %376 = vmatprep.subr.mxu0 0.0
    %v377 = vand.u32 %v94, 4294901760
    %v378 = vsub.f32 %v94, %v377
    %v379 = vand.u32 %v378, 4294901760
    %v380 = vsub.f32 %v378, %v379
    %v381 = vand.u32 %v380, 4294901760
    %382 = vmatpush1.msra.mxu0 %v381
    %383 = vmatprep.subr.mxu0 0.0
    %v384 = vand.u32 %v95, 4294901760
    %v385 = vsub.f32 %v95, %v384
    %v386 = vand.u32 %v385, 4294901760
    %v387 = vsub.f32 %v385, %v386
    %v388 = vand.u32 %v387, 4294901760
    %389 = vmatpush1.msra.mxu0 %v388
    %390 = vmatprep.subr.mxu0 0.0
    %v391 = vand.u32 %v96, 4294901760
    %v392 = vsub.f32 %v96, %v391
    %v393 = vand.u32 %v392, 4294901760
    %v394 = vsub.f32 %v392, %v393
    %v395 = vand.u32 %v394, 4294901760
    %396 = vmatpush1.msra.mxu0 %v395
    %397 = vmatprep.subr.mxu0 0.0
    %v398 = vand.u32 %v97, 4294901760
    %v399 = vsub.f32 %v97, %v398
    %v400 = vand.u32 %v399, 4294901760
    %v401 = vsub.f32 %v399, %v400
    %v402 = vand.u32 %v401, 4294901760
    %403 = vmatpush1.msra.mxu0 %v402
    %404 = vmatprep.subr.mxu0 0.0
    %v405 = vand.u32 %v98, 4294901760
    %v406 = vsub.f32 %v98, %v405
    %v407 = vand.u32 %v406, 4294901760
    %v408 = vsub.f32 %v406, %v407
    %v409 = vand.u32 %v408, 4294901760
    %410 = vmatpush1.msra.mxu0 %v409
    %411 = vmatprep.subr.mxu0 0.0
    %v412 = vand.u32 %v99, 4294901760
    %v413 = vsub.f32 %v99, %v412
    %v414 = vand.u32 %v413, 4294901760
    %v415 = vsub.f32 %v413, %v414
    %v416 = vand.u32 %v415, 4294901760
    %417 = vmatpush1.msra.mxu0 %v416
    %418 = vmatprep.subr.mxu0 0.0
    %v419 = vand.u32 %v100, 4294901760
    %v420 = vsub.f32 %v100, %v419
    %v421 = vand.u32 %v420, 4294901760
    %v422 = vsub.f32 %v420, %v421
    %v423 = vand.u32 %v422, 4294901760
    %424 = vmatpush1.msra.mxu0 %v423
    %425 = vmatprep.subr.mxu0 0.0
    %v426 = vand.u32 %v101, 4294901760
    %v427 = vsub.f32 %v101, %v426
    %v428 = vand.u32 %v427, 4294901760
    %v429 = vsub.f32 %v427, %v428
    %v430 = vand.u32 %v429, 4294901760
    %431 = vmatpush1.msra.mxu0 %v430
    %432 = vmatprep.subr.mxu0 0.0
    %v433 = vand.u32 %v102, 4294901760
    %v434 = vsub.f32 %v102, %v433
    %v435 = vand.u32 %v434, 4294901760
    %v436 = vsub.f32 %v434, %v435
    %v437 = vand.u32 %v436, 4294901760
    %438 = vmatpush1.msra.mxu0 %v437
    %v439 = vand.u32 %v57, 4294901760
    %440 = vmatprep.mubr.f32.mxu0 %v439
    %v441 = vand.u32 %v56, 4294901760
    %442 = vmatmul.mubr.f32.gmra.mrb[0].mxu0 %v441
    %v443 = vpop.f32.mrb[0].mxu0
    %v444 = vadd.f32 %v212, %v443
    %v445 = vpop.f32.mrb[0].mxu0
    %446 = vdwg.mxu0
    %447 = vmatprep.subr.mxu0 0.0
    %v448 = vand.u32 %v71, 4294901760
    %v449 = vsub.f32 %v71, %v448
    %450 = vmatpush1.msra.mxu0 %v449
    %451 = vmatprep.subr.mxu0 0.0
    %v452 = vand.u32 %v72, 4294901760
    %v453 = vsub.f32 %v72, %v452
    %454 = vmatpush1.msra.mxu0 %v453
    %455 = vmatprep.subr.mxu0 0.0
    %v456 = vand.u32 %v73, 4294901760
    %v457 = vsub.f32 %v73, %v456
    %458 = vmatpush1.msra.mxu0 %v457
    %459 = vmatprep.subr.mxu0 0.0
    %v460 = vand.u32 %v74, 4294901760
    %v461 = vsub.f32 %v74, %v460
    %462 = vmatpush1.msra.mxu0 %v461
    %463 = vmatprep.subr.mxu0 0.0
    %v464 = vand.u32 %v75, 4294901760
    %v465 = vsub.f32 %v75, %v464
    %466 = vmatpush1.msra.mxu0 %v465
    %467 = vmatprep.subr.mxu0 0.0
    %v468 = vand.u32 %v76, 4294901760
    %v469 = vsub.f32 %v76, %v468
    %470 = vmatpush1.msra.mxu0 %v469
    %471 = vmatprep.subr.mxu0 0.0
    %v472 = vand.u32 %v77, 4294901760
    %v473 = vsub.f32 %v77, %v472
    %474 = vmatpush1.msra.mxu0 %v473
    %475 = vmatprep.subr.mxu0 0.0
    %v476 = vand.u32 %v78, 4294901760
    %v477 = vsub.f32 %v78, %v476
    %478 = vmatpush1.msra.mxu0 %v477
    %479 = vmatprep.subr.mxu0 0.0
    %v480 = vand.u32 %v79, 4294901760
    %v481 = vsub.f32 %v79, %v480
    %482 = vmatpush1.msra.mxu0 %v481
    %483 = vmatprep.subr.mxu0 0.0
    %v484 = vand.u32 %v80, 4294901760
    %v485 = vsub.f32 %v80, %v484
    %486 = vmatpush1.msra.mxu0 %v485
    %487 = vmatprep.subr.mxu0 0.0
    %v488 = vand.u32 %v81, 4294901760
    %v489 = vsub.f32 %v81, %v488
    %490 = vmatpush1.msra.mxu0 %v489
    %491 = vmatprep.subr.mxu0 0.0
    %v492 = vand.u32 %v82, 4294901760
    %v493 = vsub.f32 %v82, %v492
    %494 = vmatpush1.msra.mxu0 %v493
    %495 = vmatprep.subr.mxu0 0.0
    %v496 = vand.u32 %v83, 4294901760
    %v497 = vsub.f32 %v83, %v496
    %498 = vmatpush1.msra.mxu0 %v497
    %499 = vmatprep.subr.mxu0 0.0
    %v500 = vand.u32 %v84, 4294901760
    %v501 = vsub.f32 %v84, %v500
    %502 = vmatpush1.msra.mxu0 %v501
    %503 = vmatprep.subr.mxu0 0.0
    %v504 = vand.u32 %v85, 4294901760
    %v505 = vsub.f32 %v85, %v504
    %506 = vmatpush1.msra.mxu0 %v505
    %507 = vmatprep.subr.mxu0 0.0
    %v508 = vand.u32 %v86, 4294901760
    %v509 = vsub.f32 %v86, %v508
    %510 = vmatpush1.msra.mxu0 %v509
    %511 = vmatprep.subr.mxu0 0.0
    %v512 = vand.u32 %v87, 4294901760
    %v513 = vsub.f32 %v87, %v512
    %514 = vmatpush1.msra.mxu0 %v513
    %515 = vmatprep.subr.mxu0 0.0
    %v516 = vand.u32 %v88, 4294901760
    %v517 = vsub.f32 %v88, %v516
    %518 = vmatpush1.msra.mxu0 %v517
    %519 = vmatprep.subr.mxu0 0.0
    %v520 = vand.u32 %v89, 4294901760
    %v521 = vsub.f32 %v89, %v520
    %522 = vmatpush1.msra.mxu0 %v521
    %523 = vmatprep.subr.mxu0 0.0
    %v524 = vand.u32 %v90, 4294901760
    %v525 = vsub.f32 %v90, %v524
    %526 = vmatpush1.msra.mxu0 %v525
    %527 = vmatprep.subr.mxu0 0.0
    %v528 = vand.u32 %v91, 4294901760
    %v529 = vsub.f32 %v91, %v528
    %530 = vmatpush1.msra.mxu0 %v529
    %531 = vmatprep.subr.mxu0 0.0
    %v532 = vand.u32 %v92, 4294901760
    %v533 = vsub.f32 %v92, %v532
    %534 = vmatpush1.msra.mxu0 %v533
    %535 = vmatprep.subr.mxu0 0.0
    %v536 = vand.u32 %v93, 4294901760
    %v537 = vsub.f32 %v93, %v536
    %538 = vmatpush1.msra.mxu0 %v537
    %539 = vmatprep.subr.mxu0 0.0
    %v540 = vand.u32 %v94, 4294901760
    %v541 = vsub.f32 %v94, %v540
    %542 = vmatpush1.msra.mxu0 %v541
    %543 = vmatprep.subr.mxu0 0.0
    %v544 = vand.u32 %v95, 4294901760
    %v545 = vsub.f32 %v95, %v544
    %546 = vmatpush1.msra.mxu0 %v545
    %547 = vmatprep.subr.mxu0 0.0
    %v548 = vand.u32 %v96, 4294901760
    %v549 = vsub.f32 %v96, %v548
    %550 = vmatpush1.msra.mxu0 %v549
    %551 = vmatprep.subr.mxu0 0.0
    %v552 = vand.u32 %v97, 4294901760
    %v553 = vsub.f32 %v97, %v552
    %554 = vmatpush1.msra.mxu0 %v553
    %555 = vmatprep.subr.mxu0 0.0
    %v556 = vand.u32 %v98, 4294901760
    %v557 = vsub.f32 %v98, %v556
    %558 = vmatpush1.msra.mxu0 %v557
    %559 = vmatprep.subr.mxu0 0.0
    %v560 = vand.u32 %v99, 4294901760
    %v561 = vsub.f32 %v99, %v560
    %562 = vmatpush1.msra.mxu0 %v561
    %563 = vmatprep.subr.mxu0 0.0
    %v564 = vand.u32 %v100, 4294901760
    %v565 = vsub.f32 %v100, %v564
    %566 = vmatpush1.msra.mxu0 %v565
    %567 = vmatprep.subr.mxu0 0.0
    %v568 = vand.u32 %v101, 4294901760
    %v569 = vsub.f32 %v101, %v568
    %570 = vmatpush1.msra.mxu0 %v569
    %571 = vmatprep.subr.mxu0 0.0
    %v572 = vand.u32 %v102, 4294901760
    %v573 = vsub.f32 %v102, %v572
    %574 = vmatpush1.msra.mxu0 %v573
    %v575 = vand.u32 %v57, 4294901760
    %v576 = vsub.f32 %v57, %v575
    %577 = vmatprep.mubr.f32.mxu0 %v576
    %v578 = vand.u32 %v56, 4294901760
    %v579 = vsub.f32 %v56, %v578
    %580 = vmatmul.mubr.f32.gmra.mrb[0].mxu0 %v579
    %v581 = vpop.f32.mrb[0].mxu0
    %v582 = vadd.f32 %v444, %v581
    %v583 = vpop.f32.mrb[0].mxu0
    %584 = vdwg.mxu0
    %585 = vmatprep.subr.mxu0 0.0
    %v586 = vand.u32 %v71, 4294901760
    %587 = vmatpush1.msra.mxu0 %v586
    %588 = vmatprep.subr.mxu0 0.0
    %v589 = vand.u32 %v72, 4294901760
    %590 = vmatpush1.msra.mxu0 %v589
    %591 = vmatprep.subr.mxu0 0.0
    %v592 = vand.u32 %v73, 4294901760
    %593 = vmatpush1.msra.mxu0 %v592
    %594 = vmatprep.subr.mxu0 0.0
    %v595 = vand.u32 %v74, 4294901760
    %596 = vmatpush1.msra.mxu0 %v595
    %597 = vmatprep.subr.mxu0 0.0
    %v598 = vand.u32 %v75, 4294901760
    %599 = vmatpush1.msra.mxu0 %v598
    %600 = vmatprep.subr.mxu0 0.0
    %v601 = vand.u32 %v76, 4294901760
    %602 = vmatpush1.msra.mxu0 %v601
    %603 = vmatprep.subr.mxu0 0.0
    %v604 = vand.u32 %v77, 4294901760
    %605 = vmatpush1.msra.mxu0 %v604
    %606 = vmatprep.subr.mxu0 0.0
    %v607 = vand.u32 %v78, 4294901760
    %608 = vmatpush1.msra.mxu0 %v607
    %609 = vmatprep.subr.mxu0 0.0
    %v610 = vand.u32 %v79, 4294901760
    %611 = vmatpush1.msra.mxu0 %v610
    %612 = vmatprep.subr.mxu0 0.0
    %v613 = vand.u32 %v80, 4294901760
    %614 = vmatpush1.msra.mxu0 %v613
    %615 = vmatprep.subr.mxu0 0.0
    %v616 = vand.u32 %v81, 4294901760
    %617 = vmatpush1.msra.mxu0 %v616
    %618 = vmatprep.subr.mxu0 0.0
    %v619 = vand.u32 %v82, 4294901760
    %620 = vmatpush1.msra.mxu0 %v619
    %621 = vmatprep.subr.mxu0 0.0
    %v622 = vand.u32 %v83, 4294901760
    %623 = vmatpush1.msra.mxu0 %v622
    %624 = vmatprep.subr.mxu0 0.0
    %v625 = vand.u32 %v84, 4294901760
    %626 = vmatpush1.msra.mxu0 %v625
    %627 = vmatprep.subr.mxu0 0.0
    %v628 = vand.u32 %v85, 4294901760
    %629 = vmatpush1.msra.mxu0 %v628
    %630 = vmatprep.subr.mxu0 0.0
    %v631 = vand.u32 %v86, 4294901760
    %632 = vmatpush1.msra.mxu0 %v631
    %633 = vmatprep.subr.mxu0 0.0
    %v634 = vand.u32 %v87, 4294901760
    %635 = vmatpush1.msra.mxu0 %v634
    %636 = vmatprep.subr.mxu0 0.0
    %v637 = vand.u32 %v88, 4294901760
    %638 = vmatpush1.msra.mxu0 %v637
    %639 = vmatprep.subr.mxu0 0.0
    %v640 = vand.u32 %v89, 4294901760
    %641 = vmatpush1.msra.mxu0 %v640
    %642 = vmatprep.subr.mxu0 0.0
    %v643 = vand.u32 %v90, 4294901760
    %644 = vmatpush1.msra.mxu0 %v643
    %645 = vmatprep.subr.mxu0 0.0
    %v646 = vand.u32 %v91, 4294901760
    %647 = vmatpush1.msra.mxu0 %v646
    %648 = vmatprep.subr.mxu0 0.0
    %v649 = vand.u32 %v92, 4294901760
    %650 = vmatpush1.msra.mxu0 %v649
    %651 = vmatprep.subr.mxu0 0.0
    %v652 = vand.u32 %v93, 4294901760
    %653 = vmatpush1.msra.mxu0 %v652
    %654 = vmatprep.subr.mxu0 0.0
    %v655 = vand.u32 %v94, 4294901760
    %656 = vmatpush1.msra.mxu0 %v655
    %657 = vmatprep.subr.mxu0 0.0
    %v658 = vand.u32 %v95, 4294901760
    %659 = vmatpush1.msra.mxu0 %v658
    %660 = vmatprep.subr.mxu0 0.0
    %v661 = vand.u32 %v96, 4294901760
    %662 = vmatpush1.msra.mxu0 %v661
    %663 = vmatprep.subr.mxu0 0.0
    %v664 = vand.u32 %v97, 4294901760
    %665 = vmatpush1.msra.mxu0 %v664
    %666 = vmatprep.subr.mxu0 0.0
    %v667 = vand.u32 %v98, 4294901760
    %668 = vmatpush1.msra.mxu0 %v667
    %669 = vmatprep.subr.mxu0 0.0
    %v670 = vand.u32 %v99, 4294901760
    %671 = vmatpush1.msra.mxu0 %v670
    %672 = vmatprep.subr.mxu0 0.0
    %v673 = vand.u32 %v100, 4294901760
    %674 = vmatpush1.msra.mxu0 %v673
    %675 = vmatprep.subr.mxu0 0.0
    %v676 = vand.u32 %v101, 4294901760
    %677 = vmatpush1.msra.mxu0 %v676
    %678 = vmatprep.subr.mxu0 0.0
    %v679 = vand.u32 %v102, 4294901760
    %680 = vmatpush1.msra.mxu0 %v679
    %v681 = vand.u32 %v57, 4294901760
    %v682 = vsub.f32 %v57, %v681
    %v683 = vand.u32 %v682, 4294901760
    %684 = vmatprep.mubr.f32.mxu0 %v683
    %v685 = vand.u32 %v56, 4294901760
    %v686 = vsub.f32 %v56, %v685
    %v687 = vand.u32 %v686, 4294901760
    %688 = vmatmul.mubr.f32.gmra.mrb[0].mxu0 %v687
    %v689 = vpop.f32.mrb[0].mxu0
    %v690 = vadd.f32 %v582, %v689
    %v691 = vpop.f32.mrb[0].mxu0
    %692 = vdwg.mxu0
    %693 = vmatprep.subr.mxu0 0.0
    %v694 = vand.u32 %v71, 4294901760
    %v695 = vsub.f32 %v71, %v694
    %v696 = vand.u32 %v695, 4294901760
    %697 = vmatpush1.msra.mxu0 %v696
    %698 = vmatprep.subr.mxu0 0.0
    %v699 = vand.u32 %v72, 4294901760
    %v700 = vsub.f32 %v72, %v699
    %v701 = vand.u32 %v700, 4294901760
    %702 = vmatpush1.msra.mxu0 %v701
    %703 = vmatprep.subr.mxu0 0.0
    %v704 = vand.u32 %v73, 4294901760
    %v705 = vsub.f32 %v73, %v704
    %v706 = vand.u32 %v705, 4294901760
    %707 = vmatpush1.msra.mxu0 %v706
    %708 = vmatprep.subr.mxu0 0.0
    %v709 = vand.u32 %v74, 4294901760
    %v710 = vsub.f32 %v74, %v709
    %v711 = vand.u32 %v710, 4294901760
    %712 = vmatpush1.msra.mxu0 %v711
    %713 = vmatprep.subr.mxu0 0.0
    %v714 = vand.u32 %v75, 4294901760
    %v715 = vsub.f32 %v75, %v714
    %v716 = vand.u32 %v715, 4294901760
    %717 = vmatpush1.msra.mxu0 %v716
    %718 = vmatprep.subr.mxu0 0.0
    %v719 = vand.u32 %v76, 4294901760
    %v720 = vsub.f32 %v76, %v719
    %v721 = vand.u32 %v720, 4294901760
    %722 = vmatpush1.msra.mxu0 %v721
    %723 = vmatprep.subr.mxu0 0.0
    %v724 = vand.u32 %v77, 4294901760
    %v725 = vsub.f32 %v77, %v724
    %v726 = vand.u32 %v725, 4294901760
    %727 = vmatpush1.msra.mxu0 %v726
    %728 = vmatprep.subr.mxu0 0.0
    %v729 = vand.u32 %v78, 4294901760
    %v730 = vsub.f32 %v78, %v729
    %v731 = vand.u32 %v730, 4294901760
    %732 = vmatpush1.msra.mxu0 %v731
    %733 = vmatprep.subr.mxu0 0.0
    %v734 = vand.u32 %v79, 4294901760
    %v735 = vsub.f32 %v79, %v734
    %v736 = vand.u32 %v735, 4294901760
    %737 = vmatpush1.msra.mxu0 %v736
    %738 = vmatprep.subr.mxu0 0.0
    %v739 = vand.u32 %v80, 4294901760
    %v740 = vsub.f32 %v80, %v739
    %v741 = vand.u32 %v740, 4294901760
    %742 = vmatpush1.msra.mxu0 %v741
    %743 = vmatprep.subr.mxu0 0.0
    %v744 = vand.u32 %v81, 4294901760
    %v745 = vsub.f32 %v81, %v744
    %v746 = vand.u32 %v745, 4294901760
    %747 = vmatpush1.msra.mxu0 %v746
    %748 = vmatprep.subr.mxu0 0.0
    %v749 = vand.u32 %v82, 4294901760
    %v750 = vsub.f32 %v82, %v749
    %v751 = vand.u32 %v750, 4294901760
    %752 = vmatpush1.msra.mxu0 %v751
    %753 = vmatprep.subr.mxu0 0.0
    %v754 = vand.u32 %v83, 4294901760
    %v755 = vsub.f32 %v83, %v754
    %v756 = vand.u32 %v755, 4294901760
    %757 = vmatpush1.msra.mxu0 %v756
    %758 = vmatprep.subr.mxu0 0.0
    %v759 = vand.u32 %v84, 4294901760
    %v760 = vsub.f32 %v84, %v759
    %v761 = vand.u32 %v760, 4294901760
    %762 = vmatpush1.msra.mxu0 %v761
    %763 = vmatprep.subr.mxu0 0.0
    %v764 = vand.u32 %v85, 4294901760
    %v765 = vsub.f32 %v85, %v764
    %v766 = vand.u32 %v765, 4294901760
    %767 = vmatpush1.msra.mxu0 %v766
    %768 = vmatprep.subr.mxu0 0.0
    %v769 = vand.u32 %v86, 4294901760
    %v770 = vsub.f32 %v86, %v769
    %v771 = vand.u32 %v770, 4294901760
    %772 = vmatpush1.msra.mxu0 %v771
    %773 = vmatprep.subr.mxu0 0.0
    %v774 = vand.u32 %v87, 4294901760
    %v775 = vsub.f32 %v87, %v774
    %v776 = vand.u32 %v775, 4294901760
    %777 = vmatpush1.msra.mxu0 %v776
    %778 = vmatprep.subr.mxu0 0.0
    %v779 = vand.u32 %v88, 4294901760
    %v780 = vsub.f32 %v88, %v779
    %v781 = vand.u32 %v780, 4294901760
    %782 = vmatpush1.msra.mxu0 %v781
    %783 = vmatprep.subr.mxu0 0.0
    %v784 = vand.u32 %v89, 4294901760
    %v785 = vsub.f32 %v89, %v784
    %v786 = vand.u32 %v785, 4294901760
    %787 = vmatpush1.msra.mxu0 %v786
    %788 = vmatprep.subr.mxu0 0.0
    %v789 = vand.u32 %v90, 4294901760
    %v790 = vsub.f32 %v90, %v789
    %v791 = vand.u32 %v790, 4294901760
    %792 = vmatpush1.msra.mxu0 %v791
    %793 = vmatprep.subr.mxu0 0.0
    %v794 = vand.u32 %v91, 4294901760
    %v795 = vsub.f32 %v91, %v794
    %v796 = vand.u32 %v795, 4294901760
    %797 = vmatpush1.msra.mxu0 %v796
    %798 = vmatprep.subr.mxu0 0.0
    %v799 = vand.u32 %v92, 4294901760
    %v800 = vsub.f32 %v92, %v799
    %v801 = vand.u32 %v800, 4294901760
    %802 = vmatpush1.msra.mxu0 %v801
    %803 = vmatprep.subr.mxu0 0.0
    %v804 = vand.u32 %v93, 4294901760
    %v805 = vsub.f32 %v93, %v804
    %v806 = vand.u32 %v805, 4294901760
    %807 = vmatpush1.msra.mxu0 %v806
    %808 = vmatprep.subr.mxu0 0.0
    %v809 = vand.u32 %v94, 4294901760
    %v810 = vsub.f32 %v94, %v809
    %v811 = vand.u32 %v810, 4294901760
    %812 = vmatpush1.msra.mxu0 %v811
    %813 = vmatprep.subr.mxu0 0.0
    %v814 = vand.u32 %v95, 4294901760
    %v815 = vsub.f32 %v95, %v814
    %v816 = vand.u32 %v815, 4294901760
    %817 = vmatpush1.msra.mxu0 %v816
    %818 = vmatprep.subr.mxu0 0.0
    %v819 = vand.u32 %v96, 4294901760
    %v820 = vsub.f32 %v96, %v819
    %v821 = vand.u32 %v820, 4294901760
    %822 = vmatpush1.msra.mxu0 %v821
    %823 = vmatprep.subr.mxu0 0.0
    %v824 = vand.u32 %v97, 4294901760
    %v825 = vsub.f32 %v97, %v824
    %v826 = vand.u32 %v825, 4294901760
    %827 = vmatpush1.msra.mxu0 %v826
    %828 = vmatprep.subr.mxu0 0.0
    %v829 = vand.u32 %v98, 4294901760
    %v830 = vsub.f32 %v98, %v829
    %v831 = vand.u32 %v830, 4294901760
    %832 = vmatpush1.msra.mxu0 %v831
    %833 = vmatprep.subr.mxu0 0.0
    %v834 = vand.u32 %v99, 4294901760
    %v835 = vsub.f32 %v99, %v834
    %v836 = vand.u32 %v835, 4294901760
    %837 = vmatpush1.msra.mxu0 %v836
    %838 = vmatprep.subr.mxu0 0.0
    %v839 = vand.u32 %v100, 4294901760
    %v840 = vsub.f32 %v100, %v839
    %v841 = vand.u32 %v840, 4294901760
    %842 = vmatpush1.msra.mxu0 %v841
    %843 = vmatprep.subr.mxu0 0.0
    %v844 = vand.u32 %v101, 4294901760
    %v845 = vsub.f32 %v101, %v844
    %v846 = vand.u32 %v845, 4294901760
    %847 = vmatpush1.msra.mxu0 %v846
    %848 = vmatprep.subr.mxu0 0.0
    %v849 = vand.u32 %v102, 4294901760
    %v850 = vsub.f32 %v102, %v849
    %v851 = vand.u32 %v850, 4294901760
    %852 = vmatpush1.msra.mxu0 %v851
    %v853 = vand.u32 %v57, 4294901760
    %854 = vmatprep.mubr.f32.mxu0 %v853
    %v855 = vand.u32 %v56, 4294901760
    %856 = vmatmul.mubr.f32.gmra.mrb[0].mxu0 %v855
    %v857 = vpop.f32.mrb[0].mxu0
    %v858 = vadd.f32 %v690, %v857
    %v859 = vpop.f32.mrb[0].mxu0
    %860 = vdwg.mxu0
    %861 = vmatprep.subr.mxu0 0.0
    %v862 = vand.u32 %v71, 4294901760
    %863 = vmatpush1.msra.mxu0 %v862
    %864 = vmatprep.subr.mxu0 0.0
    %v865 = vand.u32 %v72, 4294901760
    %866 = vmatpush1.msra.mxu0 %v865
    %867 = vmatprep.subr.mxu0 0.0
    %v868 = vand.u32 %v73, 4294901760
    %869 = vmatpush1.msra.mxu0 %v868
    %870 = vmatprep.subr.mxu0 0.0
    %v871 = vand.u32 %v74, 4294901760
    %872 = vmatpush1.msra.mxu0 %v871
    %873 = vmatprep.subr.mxu0 0.0
    %v874 = vand.u32 %v75, 4294901760
    %875 = vmatpush1.msra.mxu0 %v874
    %876 = vmatprep.subr.mxu0 0.0
    %v877 = vand.u32 %v76, 4294901760
    %878 = vmatpush1.msra.mxu0 %v877
    %879 = vmatprep.subr.mxu0 0.0
    %v880 = vand.u32 %v77, 4294901760
    %881 = vmatpush1.msra.mxu0 %v880
    %882 = vmatprep.subr.mxu0 0.0
    %v883 = vand.u32 %v78, 4294901760
    %884 = vmatpush1.msra.mxu0 %v883
    %885 = vmatprep.subr.mxu0 0.0
    %v886 = vand.u32 %v79, 4294901760
    %887 = vmatpush1.msra.mxu0 %v886
    %888 = vmatprep.subr.mxu0 0.0
    %v889 = vand.u32 %v80, 4294901760
    %890 = vmatpush1.msra.mxu0 %v889
    %891 = vmatprep.subr.mxu0 0.0
    %v892 = vand.u32 %v81, 4294901760
    %893 = vmatpush1.msra.mxu0 %v892
    %894 = vmatprep.subr.mxu0 0.0
    %v895 = vand.u32 %v82, 4294901760
    %896 = vmatpush1.msra.mxu0 %v895
    %897 = vmatprep.subr.mxu0 0.0
    %v898 = vand.u32 %v83, 4294901760
    %899 = vmatpush1.msra.mxu0 %v898
    %900 = vmatprep.subr.mxu0 0.0
    %v901 = vand.u32 %v84, 4294901760
    %902 = vmatpush1.msra.mxu0 %v901
    %903 = vmatprep.subr.mxu0 0.0
    %v904 = vand.u32 %v85, 4294901760
    %905 = vmatpush1.msra.mxu0 %v904
    %906 = vmatprep.subr.mxu0 0.0
    %v907 = vand.u32 %v86, 4294901760
    %908 = vmatpush1.msra.mxu0 %v907
    %909 = vmatprep.subr.mxu0 0.0
    %v910 = vand.u32 %v87, 4294901760
    %911 = vmatpush1.msra.mxu0 %v910
    %912 = vmatprep.subr.mxu0 0.0
    %v913 = vand.u32 %v88, 4294901760
    %914 = vmatpush1.msra.mxu0 %v913
    %915 = vmatprep.subr.mxu0 0.0
    %v916 = vand.u32 %v89, 4294901760
    %917 = vmatpush1.msra.mxu0 %v916
    %918 = vmatprep.subr.mxu0 0.0
    %v919 = vand.u32 %v90, 4294901760
    %920 = vmatpush1.msra.mxu0 %v919
    %921 = vmatprep.subr.mxu0 0.0
    %v922 = vand.u32 %v91, 4294901760
    %923 = vmatpush1.msra.mxu0 %v922
    %924 = vmatprep.subr.mxu0 0.0
    %v925 = vand.u32 %v92, 4294901760
    %926 = vmatpush1.msra.mxu0 %v925
    %927 = vmatprep.subr.mxu0 0.0
    %v928 = vand.u32 %v93, 4294901760
    %929 = vmatpush1.msra.mxu0 %v928
    %930 = vmatprep.subr.mxu0 0.0
    %v931 = vand.u32 %v94, 4294901760
    %932 = vmatpush1.msra.mxu0 %v931
    %933 = vmatprep.subr.mxu0 0.0
    %v934 = vand.u32 %v95, 4294901760
    %935 = vmatpush1.msra.mxu0 %v934
    %936 = vmatprep.subr.mxu0 0.0
    %v937 = vand.u32 %v96, 4294901760
    %938 = vmatpush1.msra.mxu0 %v937
    %939 = vmatprep.subr.mxu0 0.0
    %v940 = vand.u32 %v97, 4294901760
    %941 = vmatpush1.msra.mxu0 %v940
    %942 = vmatprep.subr.mxu0 0.0
    %v943 = vand.u32 %v98, 4294901760
    %944 = vmatpush1.msra.mxu0 %v943
    %945 = vmatprep.subr.mxu0 0.0
    %v946 = vand.u32 %v99, 4294901760
    %947 = vmatpush1.msra.mxu0 %v946
    %948 = vmatprep.subr.mxu0 0.0
    %v949 = vand.u32 %v100, 4294901760
    %950 = vmatpush1.msra.mxu0 %v949
    %951 = vmatprep.subr.mxu0 0.0
    %v952 = vand.u32 %v101, 4294901760
    %953 = vmatpush1.msra.mxu0 %v952
    %954 = vmatprep.subr.mxu0 0.0
    %v955 = vand.u32 %v102, 4294901760
    %956 = vmatpush1.msra.mxu0 %v955
    %v957 = vand.u32 %v57, 4294901760
    %958 = vmatprep.mubr.f32.mxu0 %v957
    %v959 = vand.u32 %v56, 4294901760
    %960 = vmatmul.mubr.f32.gmra.mrb[0].mxu0 %v959
    %v961 = vpop.f32.mrb[0].mxu0
    %v962 = vadd.f32 %v858, %v961
    %v963 = vpop.f32.mrb[0].mxu0
    %964 = vdwg.mxu0
    %v965 = vand.u32 2147483647, %v962
    %966 = vadd.xlane.f32.xlu0 %v965
    %v967 = vpop.xlane.xlu0 %966
    %v968 = vrot.slane %v967, 4
    %v969 = vadd.f32 %v967, %v968
    %v970 = vrot.slane %v969, 2
    %v971 = vadd.f32 %v969, %v970
    %v972 = vrot.slane %v971, 1
    %v973 = vadd.f32 %v971, %v972
    %s974 = vtos %v973
    %s975 = sadd.f32 %s70, %s974
    %v976 = vstv %s975
    %977 = vst [vmem:[#allocation8] sm:$0xff] %v976
    // Predicated region
    $region26: #{tpu_custom_call.1} parent=1 // pred_check
      _
    $region27: #{tpu_custom_call.1} parent=1 // pred_check_branch
      %979 = sbr.rel (0) target = $region29
    $region28: #{tpu_custom_call.1} parent=1 // pred_region
      %s981 = ssub.s32 128, 128
      %982 = vsyncadd [#allocation4], %s981
      %s984 = sshll.u32 [#allocation8], 4
      %s985 = int_to_ptr.vmem [resolvable:$true] %s984
      %987 = dma.vmem_to_hbm [thread:$0]  %s985, 128, %s3, [#allocation4]
    $region29: #{tpu_custom_call.1} parent=1 // pred_fallthru
      _
    // Predicated region
    $region30: #{tpu_custom_call.1} parent=1 // pred_check
      _
    $region31: #{tpu_custom_call.1} parent=1 // pred_check_branch
      %989 = sbr.rel (0) target = $region33
    $region32: #{tpu_custom_call.1} parent=1 // pred_region
      %990 = dma.done [#allocation4], 128
    $region33: #{tpu_custom_call.1} parent=1 // pred_fallthru
      _
    %991 = vsyncpa [#allocation3], 1
    %992 = vsyncpa [#allocation6], 1
    %993 = vsyncpa [#allocation4], 1

// kernel: tpu_custom_call.1
$region0: #{tpu_custom_call.1}
  #allocation0 [shape = 'u32[]', space=smem, size = 0x4, offset = 0x4, fixed_abs, tag = 'smem constant byte address 0x4 - core index']
  #allocation1 [shape = 'u32[144,128]{1,0:T(1,128)}', space=vmem, size = 0x12000, scoped, tag = 'internal scratch']
  %s0 = inlined_call_operand.hbm [shape: f32[8,256], index: 0, kind: input, shape index: {}]
  %s1 = inlined_call_operand.hbm [shape: f32[8,256], index: 1, kind: input, shape index: {}]
  %s2 = inlined_call_operand.hbm [shape: f32[256,128], index: 2, kind: input, shape index: {}]
  %s3 = inlined_call_operand.hbm [shape: f32[1,8,128], index: 3, kind: output, shape index: {}]
  %s4 = sld [smem:[#allocation0]]
  $region34: #{tpu_custom_call.1} parent=0
    _
  %s6 = ssub.s32 1, %s4
  %s7 = scalar_select 0, %s6, %s4
  $region1: #{tpu_custom_call.1} parent=0
    #allocation2 [shape = 'u8[8192]{0}', space=vmem, size = 0x2000, scoped, tag = 'input window, operand 0, single buffered']
    #allocation3 [shape = 's32[1]{0}', space=sflag, size = 0x4, scoped, tag = 'scoped memory for tpu_custom_call.1']
    #allocation4 [shape = 's32[1]{0}', space=sflag, size = 0x4, scoped, tag = 'scoped memory for tpu_custom_call.1']
    #allocation5 [shape = 'u8[8192]{0}', space=vmem, size = 0x2000, scoped, tag = 'input window, operand 1, single buffered']
    #allocation6 [shape = 's32[1]{0}', space=sflag, size = 0x4, scoped, tag = 'scoped memory for tpu_custom_call.1']
    #allocation7 [shape = 'u8[131072]{0}', space=vmem, size = 0x20000, scoped, tag = 'input window, operand 2, single buffered']
    #allocation8 [shape = 'u8[4096]{0}', space=vmem, size = 0x1000, scoped, tag = 'output window, operand 0, single buffered']
    %8 = vsyncpa [#allocation3], 0
    %9 = vsyncpa [#allocation6], 0
    %10 = vsyncpa [#allocation4], 0
    // Predicated region
    $region2: #{tpu_custom_call.1} parent=1 // pred_check
      _
    $region3: #{tpu_custom_call.1} parent=1 // pred_check_branch
      %12 = sbr.rel (0) target = $region5
    $region4: #{tpu_custom_call.1} parent=1 // pred_region
      %s14 = ssub.s32 256, 256
      %15 = vsyncadd [#allocation3], %s14
      %s17 = sshll.u32 [#allocation2], 4
      %s18 = int_to_ptr.vmem [resolvable:$true] %s17
      %20 = dma.hbm_to_vmem [thread:$0]  %s0, 256, %s18, [#allocation3]
    $region5: #{tpu_custom_call.1} parent=1 // pred_fallthru
      _
    // Predicated region
    $region6: #{tpu_custom_call.1} parent=1 // pred_check
      _
    $region7: #{tpu_custom_call.1} parent=1 // pred_check_branch
      %22 = sbr.rel (0) target = $region9
    $region8: #{tpu_custom_call.1} parent=1 // pred_region
      %s24 = ssub.s32 256, 256
      %25 = vsyncadd [#allocation6], %s24
      %s27 = sshll.u32 [#allocation5], 4
      %s28 = int_to_ptr.vmem [resolvable:$true] %s27
      %30 = dma.hbm_to_vmem [thread:$0]  %s1, 256, %s28, [#allocation6]
    $region9: #{tpu_custom_call.1} parent=1 // pred_fallthru
      _
    // Predicated region
    $region10: #{tpu_custom_call.1} parent=1 // pred_check
      _
    $region11: #{tpu_custom_call.1} parent=1 // pred_check_branch
      %32 = sbr.rel (0) target = $region13
    $region12: #{tpu_custom_call.1} parent=1 // pred_region
      %s34 = ssub.s32 4096, 4096
      %35 = vsyncadd [#allocation6], %s34
      %s36 = sshll.u32 [#allocation7], 4
      %s37 = int_to_ptr.vmem [resolvable:$true] %s36
      %42 = dma.hbm_to_vmem [thread:$0]  %s2, 4096, %s37, [#allocation6], 128, 128, 8
    $region13: #{tpu_custom_call.1} parent=1 // pred_fallthru
      _
    // Predicated region
    $region14: #{tpu_custom_call.1} parent=1 // pred_check
      _
    $region15: #{tpu_custom_call.1} parent=1 // pred_check_branch
      %44 = sbr.rel (0) target = $region17
    $region16: #{tpu_custom_call.1} parent=1 // pred_region
      %45 = dma.done [#allocation3], 256
    $region17: #{tpu_custom_call.1} parent=1 // pred_fallthru
      _
    // Predicated region
    $region18: #{tpu_custom_call.1} parent=1 // pred_check
      _
    $region19: #{tpu_custom_call.1} parent=1 // pred_check_branch
      %47 = sbr.rel (0) target = $region21
    $region20: #{tpu_custom_call.1} parent=1 // pred_region
      %48 = dma.done [#allocation6], 256
    $region21: #{tpu_custom_call.1} parent=1 // pred_fallthru
      _
    // Predicated region
    $region22: #{tpu_custom_call.1} parent=1 // pred_check
      _
    $region23: #{tpu_custom_call.1} parent=1 // pred_check_branch
      %50 = sbr.rel (0) target = $region25
    $region24: #{tpu_custom_call.1} parent=1 // pred_region
      %51 = dma.done [#allocation6], 4096
    $region25: #{tpu_custom_call.1} parent=1 // pred_fallthru
      _
    %v52 = vld [vmem:[#allocation2] sm:$0xff]
    %v53 = vld [vmem:[#allocation2 + $0x8] sm:$0xff]
    %v54 = vld [vmem:[#allocation5] sm:$0xff]
    %v55 = vld [vmem:[#allocation5 + $0x8] sm:$0xff]
    %v56 = vsub.f32 %v52, %v54
    %v57 = vsub.f32 %v53, %v55
    %v58 = vand.u32 2147483647, %v56
    %v59 = vand.u32 2147483647, %v57
    %v60 = vadd.f32 %v58, %v59
    %61 = vadd.xlane.f32.xlu0 %v60
    %v62 = vpop.xlane.xlu0 %61
    %v63 = vrot.slane %v62, 4
    %v64 = vadd.f32 %v62, %v63
    %v65 = vrot.slane %v64, 2
    %v66 = vadd.f32 %v64, %v65
    %v67 = vrot.slane %v66, 1
    %v68 = vadd.f32 %v66, %v67
    %s69 = vtos %v68
    %s70 = smul.f32 %s69, 4.7683716e-07
    %v71 = vld [vmem:[#allocation7] sm:$0xff]
    %v72 = vld [vmem:[#allocation7 + $0x8] sm:$0xff]
    %v73 = vld [vmem:[#allocation7 + $0x10] sm:$0xff]
    %v74 = vld [vmem:[#allocation7 + $0x18] sm:$0xff]
    %v75 = vld [vmem:[#allocation7 + $0x20] sm:$0xff]
    %v76 = vld [vmem:[#allocation7 + $0x28] sm:$0xff]
    %v77 = vld [vmem:[#allocation7 + $0x30] sm:$0xff]
    %v78 = vld [vmem:[#allocation7 + $0x38] sm:$0xff]
    %v79 = vld [vmem:[#allocation7 + $0x40] sm:$0xff]
    %v80 = vld [vmem:[#allocation7 + $0x48] sm:$0xff]
    %v81 = vld [vmem:[#allocation7 + $0x50] sm:$0xff]
    %v82 = vld [vmem:[#allocation7 + $0x58] sm:$0xff]
    %v83 = vld [vmem:[#allocation7 + $0x60] sm:$0xff]
    %v84 = vld [vmem:[#allocation7 + $0x68] sm:$0xff]
    %v85 = vld [vmem:[#allocation7 + $0x70] sm:$0xff]
    %v86 = vld [vmem:[#allocation7 + $0x78] sm:$0xff]
    %v87 = vld [vmem:[#allocation7 + $0x80] sm:$0xff]
    %v88 = vld [vmem:[#allocation7 + $0x88] sm:$0xff]
    %v89 = vld [vmem:[#allocation7 + $0x90] sm:$0xff]
    %v90 = vld [vmem:[#allocation7 + $0x98] sm:$0xff]
    %v91 = vld [vmem:[#allocation7 + $0xa0] sm:$0xff]
    %v92 = vld [vmem:[#allocation7 + $0xa8] sm:$0xff]
    %v93 = vld [vmem:[#allocation7 + $0xb0] sm:$0xff]
    %v94 = vld [vmem:[#allocation7 + $0xb8] sm:$0xff]
    %v95 = vld [vmem:[#allocation7 + $0xc0] sm:$0xff]
    %v96 = vld [vmem:[#allocation7 + $0xc8] sm:$0xff]
    %v97 = vld [vmem:[#allocation7 + $0xd0] sm:$0xff]
    %v98 = vld [vmem:[#allocation7 + $0xd8] sm:$0xff]
    %v99 = vld [vmem:[#allocation7 + $0xe0] sm:$0xff]
    %v100 = vld [vmem:[#allocation7 + $0xe8] sm:$0xff]
    %v101 = vld [vmem:[#allocation7 + $0xf0] sm:$0xff]
    %v102 = vld [vmem:[#allocation7 + $0xf8] sm:$0xff]
    %103 = vmatprep.subr.mxu0 0.0
    %v104 = vand.u32 %v71, 4294901760
    %105 = vmatpush1.msra.mxu0 %v104
    %106 = vmatprep.subr.mxu0 0.0
    %v107 = vand.u32 %v72, 4294901760
    %108 = vmatpush1.msra.mxu0 %v107
    %109 = vmatprep.subr.mxu0 0.0
    %v110 = vand.u32 %v73, 4294901760
    %111 = vmatpush1.msra.mxu0 %v110
    %112 = vmatprep.subr.mxu0 0.0
    %v113 = vand.u32 %v74, 4294901760
    %114 = vmatpush1.msra.mxu0 %v113
    %115 = vmatprep.subr.mxu0 0.0
    %v116 = vand.u32 %v75, 4294901760
    %117 = vmatpush1.msra.mxu0 %v116
    %118 = vmatprep.subr.mxu0 0.0
    %v119 = vand.u32 %v76, 4294901760
    %120 = vmatpush1.msra.mxu0 %v119
    %121 = vmatprep.subr.mxu0 0.0
    %v122 = vand.u32 %v77, 4294901760
    %123 = vmatpush1.msra.mxu0 %v122
    %124 = vmatprep.subr.mxu0 0.0
    %v125 = vand.u32 %v78, 4294901760
    %126 = vmatpush1.msra.mxu0 %v125
    %127 = vmatprep.subr.mxu0 0.0
    %v128 = vand.u32 %v79, 4294901760
    %129 = vmatpush1.msra.mxu0 %v128
    %130 = vmatprep.subr.mxu0 0.0
    %v131 = vand.u32 %v80, 4294901760
    %132 = vmatpush1.msra.mxu0 %v131
    %133 = vmatprep.subr.mxu0 0.0
    %v134 = vand.u32 %v81, 4294901760
    %135 = vmatpush1.msra.mxu0 %v134
    %136 = vmatprep.subr.mxu0 0.0
    %v137 = vand.u32 %v82, 4294901760
    %138 = vmatpush1.msra.mxu0 %v137
    %139 = vmatprep.subr.mxu0 0.0
    %v140 = vand.u32 %v83, 4294901760
    %141 = vmatpush1.msra.mxu0 %v140
    %142 = vmatprep.subr.mxu0 0.0
    %v143 = vand.u32 %v84, 4294901760
    %144 = vmatpush1.msra.mxu0 %v143
    %145 = vmatprep.subr.mxu0 0.0
    %v146 = vand.u32 %v85, 4294901760
    %147 = vmatpush1.msra.mxu0 %v146
    %148 = vmatprep.subr.mxu0 0.0
    %v149 = vand.u32 %v86, 4294901760
    %150 = vmatpush1.msra.mxu0 %v149
    %151 = vmatprep.subr.mxu0 0.0
    %v152 = vand.u32 %v87, 4294901760
    %153 = vmatpush1.msra.mxu0 %v152
    %154 = vmatprep.subr.mxu0 0.0
    %v155 = vand.u32 %v88, 4294901760
    %156 = vmatpush1.msra.mxu0 %v155
    %157 = vmatprep.subr.mxu0 0.0
    %v158 = vand.u32 %v89, 4294901760
    %159 = vmatpush1.msra.mxu0 %v158
    %160 = vmatprep.subr.mxu0 0.0
    %v161 = vand.u32 %v90, 4294901760
    %162 = vmatpush1.msra.mxu0 %v161
    %163 = vmatprep.subr.mxu0 0.0
    %v164 = vand.u32 %v91, 4294901760
    %165 = vmatpush1.msra.mxu0 %v164
    %166 = vmatprep.subr.mxu0 0.0
    %v167 = vand.u32 %v92, 4294901760
    %168 = vmatpush1.msra.mxu0 %v167
    %169 = vmatprep.subr.mxu0 0.0
    %v170 = vand.u32 %v93, 4294901760
    %171 = vmatpush1.msra.mxu0 %v170
    %172 = vmatprep.subr.mxu0 0.0
    %v173 = vand.u32 %v94, 4294901760
    %174 = vmatpush1.msra.mxu0 %v173
    %175 = vmatprep.subr.mxu0 0.0
    %v176 = vand.u32 %v95, 4294901760
    %177 = vmatpush1.msra.mxu0 %v176
    %178 = vmatprep.subr.mxu0 0.0
    %v179 = vand.u32 %v96, 4294901760
    %180 = vmatpush1.msra.mxu0 %v179
    %181 = vmatprep.subr.mxu0 0.0
    %v182 = vand.u32 %v97, 4294901760
    %183 = vmatpush1.msra.mxu0 %v182
    %184 = vmatprep.subr.mxu0 0.0
    %v185 = vand.u32 %v98, 4294901760
    %186 = vmatpush1.msra.mxu0 %v185
    %187 = vmatprep.subr.mxu0 0.0
    %v188 = vand.u32 %v99, 4294901760
    %189 = vmatpush1.msra.mxu0 %v188
    %190 = vmatprep.subr.mxu0 0.0
    %v191 = vand.u32 %v100, 4294901760
    %192 = vmatpush1.msra.mxu0 %v191
    %193 = vmatprep.subr.mxu0 0.0
    %v194 = vand.u32 %v101, 4294901760
    %195 = vmatpush1.msra.mxu0 %v194
    %196 = vmatprep.subr.mxu0 0.0
    %v197 = vand.u32 %v102, 4294901760
    %198 = vmatpush1.msra.mxu0 %v197
    %v199 = vand.u32 %v57, 4294901760
    %v200 = vsub.f32 %v57, %v199
    %v201 = vand.u32 %v200, 4294901760
    %v202 = vsub.f32 %v200, %v201
    %v203 = vand.u32 %v202, 4294901760
    %204 = vmatprep.mubr.f32.mxu0 %v203
    %v205 = vand.u32 %v56, 4294901760
    %v206 = vsub.f32 %v56, %v205
    %v207 = vand.u32 %v206, 4294901760
    %v208 = vsub.f32 %v206, %v207
    %v209 = vand.u32 %v208, 4294901760
    %210 = vmatmul.mubr.f32.gmra.mrb[0].mxu0 %v209
    %v211 = vpop.f32.mrb[0].mxu0
    %v212 = vadd.f32 0.0, %v211
    %v213 = vpop.f32.mrb[0].mxu0
    %214 = vdwg.mxu0
    %215 = vmatprep.subr.mxu0 0.0
    %v216 = vand.u32 %v71, 4294901760
    %v217 = vsub.f32 %v71, %v216
    %v218 = vand.u32 %v217, 4294901760
    %v219 = vsub.f32 %v217, %v218
    %v220 = vand.u32 %v219, 4294901760
    %221 = vmatpush1.msra.mxu0 %v220
    %222 = vmatprep.subr.mxu0 0.0
    %v223 = vand.u32 %v72, 4294901760
    %v224 = vsub.f32 %v72, %v223
    %v225 = vand.u32 %v224, 4294901760
    %v226 = vsub.f32 %v224, %v225
    %v227 = vand.u32 %v226, 4294901760
    %228 = vmatpush1.msra.mxu0 %v227
    %229 = vmatprep.subr.mxu0 0.0
    %v230 = vand.u32 %v73, 4294901760
    %v231 = vsub.f32 %v73, %v230
    %v232 = vand.u32 %v231, 4294901760
    %v233 = vsub.f32 %v231, %v232
    %v234 = vand.u32 %v233, 4294901760
    %235 = vmatpush1.msra.mxu0 %v234
    %236 = vmatprep.subr.mxu0 0.0
    %v237 = vand.u32 %v74, 4294901760
    %v238 = vsub.f32 %v74, %v237
    %v239 = vand.u32 %v238, 4294901760
    %v240 = vsub.f32 %v238, %v239
    %v241 = vand.u32 %v240, 4294901760
    %242 = vmatpush1.msra.mxu0 %v241
    %243 = vmatprep.subr.mxu0 0.0
    %v244 = vand.u32 %v75, 4294901760
    %v245 = vsub.f32 %v75, %v244
    %v246 = vand.u32 %v245, 4294901760
    %v247 = vsub.f32 %v245, %v246
    %v248 = vand.u32 %v247, 4294901760
    %249 = vmatpush1.msra.mxu0 %v248
    %250 = vmatprep.subr.mxu0 0.0
    %v251 = vand.u32 %v76, 4294901760
    %v252 = vsub.f32 %v76, %v251
    %v253 = vand.u32 %v252, 4294901760
    %v254 = vsub.f32 %v252, %v253
    %v255 = vand.u32 %v254, 4294901760
    %256 = vmatpush1.msra.mxu0 %v255
    %257 = vmatprep.subr.mxu0 0.0
    %v258 = vand.u32 %v77, 4294901760
    %v259 = vsub.f32 %v77, %v258
    %v260 = vand.u32 %v259, 4294901760
    %v261 = vsub.f32 %v259, %v260
    %v262 = vand.u32 %v261, 4294901760
    %263 = vmatpush1.msra.mxu0 %v262
    %264 = vmatprep.subr.mxu0 0.0
    %v265 = vand.u32 %v78, 4294901760
    %v266 = vsub.f32 %v78, %v265
    %v267 = vand.u32 %v266, 4294901760
    %v268 = vsub.f32 %v266, %v267
    %v269 = vand.u32 %v268, 4294901760
    %270 = vmatpush1.msra.mxu0 %v269
    %271 = vmatprep.subr.mxu0 0.0
    %v272 = vand.u32 %v79, 4294901760
    %v273 = vsub.f32 %v79, %v272
    %v274 = vand.u32 %v273, 4294901760
    %v275 = vsub.f32 %v273, %v274
    %v276 = vand.u32 %v275, 4294901760
    %277 = vmatpush1.msra.mxu0 %v276
    %278 = vmatprep.subr.mxu0 0.0
    %v279 = vand.u32 %v80, 4294901760
    %v280 = vsub.f32 %v80, %v279
    %v281 = vand.u32 %v280, 4294901760
    %v282 = vsub.f32 %v280, %v281
    %v283 = vand.u32 %v282, 4294901760
    %284 = vmatpush1.msra.mxu0 %v283
    %285 = vmatprep.subr.mxu0 0.0
    %v286 = vand.u32 %v81, 4294901760
    %v287 = vsub.f32 %v81, %v286
    %v288 = vand.u32 %v287, 4294901760
    %v289 = vsub.f32 %v287, %v288
    %v290 = vand.u32 %v289, 4294901760
    %291 = vmatpush1.msra.mxu0 %v290
    %292 = vmatprep.subr.mxu0 0.0
    %v293 = vand.u32 %v82, 4294901760
    %v294 = vsub.f32 %v82, %v293
    %v295 = vand.u32 %v294, 4294901760
    %v296 = vsub.f32 %v294, %v295
    %v297 = vand.u32 %v296, 4294901760
    %298 = vmatpush1.msra.mxu0 %v297
    %299 = vmatprep.subr.mxu0 0.0
    %v300 = vand.u32 %v83, 4294901760
    %v301 = vsub.f32 %v83, %v300
    %v302 = vand.u32 %v301, 4294901760
    %v303 = vsub.f32 %v301, %v302
    %v304 = vand.u32 %v303, 4294901760
    %305 = vmatpush1.msra.mxu0 %v304
    %306 = vmatprep.subr.mxu0 0.0
    %v307 = vand.u32 %v84, 4294901760
    %v308 = vsub.f32 %v84, %v307
    %v309 = vand.u32 %v308, 4294901760
    %v310 = vsub.f32 %v308, %v309
    %v311 = vand.u32 %v310, 4294901760
    %312 = vmatpush1.msra.mxu0 %v311
    %313 = vmatprep.subr.mxu0 0.0
    %v314 = vand.u32 %v85, 4294901760
    %v315 = vsub.f32 %v85, %v314
    %v316 = vand.u32 %v315, 4294901760
    %v317 = vsub.f32 %v315, %v316
    %v318 = vand.u32 %v317, 4294901760
    %319 = vmatpush1.msra.mxu0 %v318
    %320 = vmatprep.subr.mxu0 0.0
    %v321 = vand.u32 %v86, 4294901760
    %v322 = vsub.f32 %v86, %v321
    %v323 = vand.u32 %v322, 4294901760
    %v324 = vsub.f32 %v322, %v323
    %v325 = vand.u32 %v324, 4294901760
    %326 = vmatpush1.msra.mxu0 %v325
    %327 = vmatprep.subr.mxu0 0.0
    %v328 = vand.u32 %v87, 4294901760
    %v329 = vsub.f32 %v87, %v328
    %v330 = vand.u32 %v329, 4294901760
    %v331 = vsub.f32 %v329, %v330
    %v332 = vand.u32 %v331, 4294901760
    %333 = vmatpush1.msra.mxu0 %v332
    %334 = vmatprep.subr.mxu0 0.0
    %v335 = vand.u32 %v88, 4294901760
    %v336 = vsub.f32 %v88, %v335
    %v337 = vand.u32 %v336, 4294901760
    %v338 = vsub.f32 %v336, %v337
    %v339 = vand.u32 %v338, 4294901760
    %340 = vmatpush1.msra.mxu0 %v339
    %341 = vmatprep.subr.mxu0 0.0
    %v342 = vand.u32 %v89, 4294901760
    %v343 = vsub.f32 %v89, %v342
    %v344 = vand.u32 %v343, 4294901760
    %v345 = vsub.f32 %v343, %v344
    %v346 = vand.u32 %v345, 4294901760
    %347 = vmatpush1.msra.mxu0 %v346
    %348 = vmatprep.subr.mxu0 0.0
    %v349 = vand.u32 %v90, 4294901760
    %v350 = vsub.f32 %v90, %v349
    %v351 = vand.u32 %v350, 4294901760
    %v352 = vsub.f32 %v350, %v351
    %v353 = vand.u32 %v352, 4294901760
    %354 = vmatpush1.msra.mxu0 %v353
    %355 = vmatprep.subr.mxu0 0.0
    %v356 = vand.u32 %v91, 4294901760
    %v357 = vsub.f32 %v91, %v356
    %v358 = vand.u32 %v357, 4294901760
    %v359 = vsub.f32 %v357, %v358
    %v360 = vand.u32 %v359, 4294901760
    %361 = vmatpush1.msra.mxu0 %v360
    %362 = vmatprep.subr.mxu0 0.0
    %v363 = vand.u32 %v92, 4294901760
    %v364 = vsub.f32 %v92, %v363
    %v365 = vand.u32 %v364, 4294901760
    %v366 = vsub.f32 %v364, %v365
    %v367 = vand.u32 %v366, 4294901760
    %368 = vmatpush1.msra.mxu0 %v367
    %369 = vmatprep.subr.mxu0 0.0
    %v370 = vand.u32 %v93, 4294901760
    %v371 = vsub.f32 %v93, %v370
    %v372 = vand.u32 %v371, 4294901760
    %v373 = vsub.f32 %v371, %v372
    %v374 = vand.u32 %v373, 4294901760
    %375 = vmatpush1.msra.mxu0 %v374
    %376 = vmatprep.subr.mxu0 0.0
    %v377 = vand.u32 %v94, 4294901760
    %v378 = vsub.f32 %v94, %v377
    %v379 = vand.u32 %v378, 4294901760
    %v380 = vsub.f32 %v378, %v379
    %v381 = vand.u32 %v380, 4294901760
    %382 = vmatpush1.msra.mxu0 %v381
    %383 = vmatprep.subr.mxu0 0.0
    %v384 = vand.u32 %v95, 4294901760
    %v385 = vsub.f32 %v95, %v384
    %v386 = vand.u32 %v385, 4294901760
    %v387 = vsub.f32 %v385, %v386
    %v388 = vand.u32 %v387, 4294901760
    %389 = vmatpush1.msra.mxu0 %v388
    %390 = vmatprep.subr.mxu0 0.0
    %v391 = vand.u32 %v96, 4294901760
    %v392 = vsub.f32 %v96, %v391
    %v393 = vand.u32 %v392, 4294901760
    %v394 = vsub.f32 %v392, %v393
    %v395 = vand.u32 %v394, 4294901760
    %396 = vmatpush1.msra.mxu0 %v395
    %397 = vmatprep.subr.mxu0 0.0
    %v398 = vand.u32 %v97, 4294901760
    %v399 = vsub.f32 %v97, %v398
    %v400 = vand.u32 %v399, 4294901760
    %v401 = vsub.f32 %v399, %v400
    %v402 = vand.u32 %v401, 4294901760
    %403 = vmatpush1.msra.mxu0 %v402
    %404 = vmatprep.subr.mxu0 0.0
    %v405 = vand.u32 %v98, 4294901760
    %v406 = vsub.f32 %v98, %v405
    %v407 = vand.u32 %v406, 4294901760
    %v408 = vsub.f32 %v406, %v407
    %v409 = vand.u32 %v408, 4294901760
    %410 = vmatpush1.msra.mxu0 %v409
    %411 = vmatprep.subr.mxu0 0.0
    %v412 = vand.u32 %v99, 4294901760
    %v413 = vsub.f32 %v99, %v412
    %v414 = vand.u32 %v413, 4294901760
    %v415 = vsub.f32 %v413, %v414
    %v416 = vand.u32 %v415, 4294901760
    %417 = vmatpush1.msra.mxu0 %v416
    %418 = vmatprep.subr.mxu0 0.0
    %v419 = vand.u32 %v100, 4294901760
    %v420 = vsub.f32 %v100, %v419
    %v421 = vand.u32 %v420, 4294901760
    %v422 = vsub.f32 %v420, %v421
    %v423 = vand.u32 %v422, 4294901760
    %424 = vmatpush1.msra.mxu0 %v423
    %425 = vmatprep.subr.mxu0 0.0
    %v426 = vand.u32 %v101, 4294901760
    %v427 = vsub.f32 %v101, %v426
    %v428 = vand.u32 %v427, 4294901760
    %v429 = vsub.f32 %v427, %v428
    %v430 = vand.u32 %v429, 4294901760
    %431 = vmatpush1.msra.mxu0 %v430
    %432 = vmatprep.subr.mxu0 0.0
    %v433 = vand.u32 %v102, 4294901760
    %v434 = vsub.f32 %v102, %v433
    %v435 = vand.u32 %v434, 4294901760
    %v436 = vsub.f32 %v434, %v435
    %v437 = vand.u32 %v436, 4294901760
    %438 = vmatpush1.msra.mxu0 %v437
    %v439 = vand.u32 %v57, 4294901760
    %440 = vmatprep.mubr.f32.mxu0 %v439
    %v441 = vand.u32 %v56, 4294901760
    %442 = vmatmul.mubr.f32.gmra.mrb[0].mxu0 %v441
    %v443 = vpop.f32.mrb[0].mxu0
    %v444 = vadd.f32 %v212, %v443
    %v445 = vpop.f32.mrb[0].mxu0
    %446 = vdwg.mxu0
    %447 = vmatprep.subr.mxu0 0.0
    %v448 = vand.u32 %v71, 4294901760
    %v449 = vsub.f32 %v71, %v448
    %450 = vmatpush1.msra.mxu0 %v449
    %451 = vmatprep.subr.mxu0 0.0
    %v452 = vand.u32 %v72, 4294901760
    %v453 = vsub.f32 %v72, %v452
    %454 = vmatpush1.msra.mxu0 %v453
    %455 = vmatprep.subr.mxu0 0.0
    %v456 = vand.u32 %v73, 4294901760
    %v457 = vsub.f32 %v73, %v456
    %458 = vmatpush1.msra.mxu0 %v457
    %459 = vmatprep.subr.mxu0 0.0
    %v460 = vand.u32 %v74, 4294901760
    %v461 = vsub.f32 %v74, %v460
    %462 = vmatpush1.msra.mxu0 %v461
    %463 = vmatprep.subr.mxu0 0.0
    %v464 = vand.u32 %v75, 4294901760
    %v465 = vsub.f32 %v75, %v464
    %466 = vmatpush1.msra.mxu0 %v465
    %467 = vmatprep.subr.mxu0 0.0
    %v468 = vand.u32 %v76, 4294901760
    %v469 = vsub.f32 %v76, %v468
    %470 = vmatpush1.msra.mxu0 %v469
    %471 = vmatprep.subr.mxu0 0.0
    %v472 = vand.u32 %v77, 4294901760
    %v473 = vsub.f32 %v77, %v472
    %474 = vmatpush1.msra.mxu0 %v473
    %475 = vmatprep.subr.mxu0 0.0
    %v476 = vand.u32 %v78, 4294901760
    %v477 = vsub.f32 %v78, %v476
    %478 = vmatpush1.msra.mxu0 %v477
    %479 = vmatprep.subr.mxu0 0.0
    %v480 = vand.u32 %v79, 4294901760
    %v481 = vsub.f32 %v79, %v480
    %482 = vmatpush1.msra.mxu0 %v481
    %483 = vmatprep.subr.mxu0 0.0
    %v484 = vand.u32 %v80, 4294901760
    %v485 = vsub.f32 %v80, %v484
    %486 = vmatpush1.msra.mxu0 %v485
    %487 = vmatprep.subr.mxu0 0.0
    %v488 = vand.u32 %v81, 4294901760
    %v489 = vsub.f32 %v81, %v488
    %490 = vmatpush1.msra.mxu0 %v489
    %491 = vmatprep.subr.mxu0 0.0
    %v492 = vand.u32 %v82, 4294901760
    %v493 = vsub.f32 %v82, %v492
    %494 = vmatpush1.msra.mxu0 %v493
    %495 = vmatprep.subr.mxu0 0.0
    %v496 = vand.u32 %v83, 4294901760
    %v497 = vsub.f32 %v83, %v496
    %498 = vmatpush1.msra.mxu0 %v497
    %499 = vmatprep.subr.mxu0 0.0
    %v500 = vand.u32 %v84, 4294901760
    %v501 = vsub.f32 %v84, %v500
    %502 = vmatpush1.msra.mxu0 %v501
    %503 = vmatprep.subr.mxu0 0.0
    %v504 = vand.u32 %v85, 4294901760
    %v505 = vsub.f32 %v85, %v504
    %506 = vmatpush1.msra.mxu0 %v505
    %507 = vmatprep.subr.mxu0 0.0
    %v508 = vand.u32 %v86, 4294901760
    %v509 = vsub.f32 %v86, %v508
    %510 = vmatpush1.msra.mxu0 %v509
    %511 = vmatprep.subr.mxu0 0.0
    %v512 = vand.u32 %v87, 4294901760
    %v513 = vsub.f32 %v87, %v512
    %514 = vmatpush1.msra.mxu0 %v513
    %515 = vmatprep.subr.mxu0 0.0
    %v516 = vand.u32 %v88, 4294901760
    %v517 = vsub.f32 %v88, %v516
    %518 = vmatpush1.msra.mxu0 %v517
    %519 = vmatprep.subr.mxu0 0.0
    %v520 = vand.u32 %v89, 4294901760
    %v521 = vsub.f32 %v89, %v520
    %522 = vmatpush1.msra.mxu0 %v521
    %523 = vmatprep.subr.mxu0 0.0
    %v524 = vand.u32 %v90, 4294901760
    %v525 = vsub.f32 %v90, %v524
    %526 = vmatpush1.msra.mxu0 %v525
    %527 = vmatprep.subr.mxu0 0.0
    %v528 = vand.u32 %v91, 4294901760
    %v529 = vsub.f32 %v91, %v528
    %530 = vmatpush1.msra.mxu0 %v529
    %531 = vmatprep.subr.mxu0 0.0
    %v532 = vand.u32 %v92, 4294901760
    %v533 = vsub.f32 %v92, %v532
    %534 = vmatpush1.msra.mxu0 %v533
    %535 = vmatprep.subr.mxu0 0.0
    %v536 = vand.u32 %v93, 4294901760
    %v537 = vsub.f32 %v93, %v536
    %538 = vmatpush1.msra.mxu0 %v537
    %539 = vmatprep.subr.mxu0 0.0
    %v540 = vand.u32 %v94, 4294901760
    %v541 = vsub.f32 %v94, %v540
    %542 = vmatpush1.msra.mxu0 %v541
    %543 = vmatprep.subr.mxu0 0.0
    %v544 = vand.u32 %v95, 4294901760
    %v545 = vsub.f32 %v95, %v544
    %546 = vmatpush1.msra.mxu0 %v545
    %547 = vmatprep.subr.mxu0 0.0
    %v548 = vand.u32 %v96, 4294901760
    %v549 = vsub.f32 %v96, %v548
    %550 = vmatpush1.msra.mxu0 %v549
    %551 = vmatprep.subr.mxu0 0.0
    %v552 = vand.u32 %v97, 4294901760
    %v553 = vsub.f32 %v97, %v552
    %554 = vmatpush1.msra.mxu0 %v553
    %555 = vmatprep.subr.mxu0 0.0
    %v556 = vand.u32 %v98, 4294901760
    %v557 = vsub.f32 %v98, %v556
    %558 = vmatpush1.msra.mxu0 %v557
    %559 = vmatprep.subr.mxu0 0.0
    %v560 = vand.u32 %v99, 4294901760
    %v561 = vsub.f32 %v99, %v560
    %562 = vmatpush1.msra.mxu0 %v561
    %563 = vmatprep.subr.mxu0 0.0
    %v564 = vand.u32 %v100, 4294901760
    %v565 = vsub.f32 %v100, %v564
    %566 = vmatpush1.msra.mxu0 %v565
    %567 = vmatprep.subr.mxu0 0.0
    %v568 = vand.u32 %v101, 4294901760
    %v569 = vsub.f32 %v101, %v568
    %570 = vmatpush1.msra.mxu0 %v569
    %571 = vmatprep.subr.mxu0 0.0
    %v572 = vand.u32 %v102, 4294901760
    %v573 = vsub.f32 %v102, %v572
    %574 = vmatpush1.msra.mxu0 %v573
    %v575 = vand.u32 %v57, 4294901760
    %v576 = vsub.f32 %v57, %v575
    %577 = vmatprep.mubr.f32.mxu0 %v576
    %v578 = vand.u32 %v56, 4294901760
    %v579 = vsub.f32 %v56, %v578
    %580 = vmatmul.mubr.f32.gmra.mrb[0].mxu0 %v579
    %v581 = vpop.f32.mrb[0].mxu0
    %v582 = vadd.f32 %v444, %v581
    %v583 = vpop.f32.mrb[0].mxu0
    %584 = vdwg.mxu0
    %585 = vmatprep.subr.mxu0 0.0
    %v586 = vand.u32 %v71, 4294901760
    %587 = vmatpush1.msra.mxu0 %v586
    %588 = vmatprep.subr.mxu0 0.0
    %v589 = vand.u32 %v72, 4294901760
    %590 = vmatpush1.msra.mxu0 %v589
    %591 = vmatprep.subr.mxu0 0.0
    %v592 = vand.u32 %v73, 4294901760
    %593 = vmatpush1.msra.mxu0 %v592
    %594 = vmatprep.subr.mxu0 0.0
    %v595 = vand.u32 %v74, 4294901760
    %596 = vmatpush1.msra.mxu0 %v595
    %597 = vmatprep.subr.mxu0 0.0
    %v598 = vand.u32 %v75, 4294901760
    %599 = vmatpush1.msra.mxu0 %v598
    %600 = vmatprep.subr.mxu0 0.0
    %v601 = vand.u32 %v76, 4294901760
    %602 = vmatpush1.msra.mxu0 %v601
    %603 = vmatprep.subr.mxu0 0.0
    %v604 = vand.u32 %v77, 4294901760
    %605 = vmatpush1.msra.mxu0 %v604
    %606 = vmatprep.subr.mxu0 0.0
    %v607 = vand.u32 %v78, 4294901760
    %608 = vmatpush1.msra.mxu0 %v607
    %609 = vmatprep.subr.mxu0 0.0
    %v610 = vand.u32 %v79, 4294901760
    %611 = vmatpush1.msra.mxu0 %v610
    %612 = vmatprep.subr.mxu0 0.0
    %v613 = vand.u32 %v80, 4294901760
    %614 = vmatpush1.msra.mxu0 %v613
    %615 = vmatprep.subr.mxu0 0.0
    %v616 = vand.u32 %v81, 4294901760
    %617 = vmatpush1.msra.mxu0 %v616
    %618 = vmatprep.subr.mxu0 0.0
    %v619 = vand.u32 %v82, 4294901760
    %620 = vmatpush1.msra.mxu0 %v619
    %621 = vmatprep.subr.mxu0 0.0
    %v622 = vand.u32 %v83, 4294901760
    %623 = vmatpush1.msra.mxu0 %v622
    %624 = vmatprep.subr.mxu0 0.0
    %v625 = vand.u32 %v84, 4294901760
    %626 = vmatpush1.msra.mxu0 %v625
    %627 = vmatprep.subr.mxu0 0.0
    %v628 = vand.u32 %v85, 4294901760
    %629 = vmatpush1.msra.mxu0 %v628
    %630 = vmatprep.subr.mxu0 0.0
    %v631 = vand.u32 %v86, 4294901760
    %632 = vmatpush1.msra.mxu0 %v631
    %633 = vmatprep.subr.mxu0 0.0
    %v634 = vand.u32 %v87, 4294901760
    %635 = vmatpush1.msra.mxu0 %v634
    %636 = vmatprep.subr.mxu0 0.0
    %v637 = vand.u32 %v88, 4294901760
    %638 = vmatpush1.msra.mxu0 %v637
    %639 = vmatprep.subr.mxu0 0.0
    %v640 = vand.u32 %v89, 4294901760
    %641 = vmatpush1.msra.mxu0 %v640
    %642 = vmatprep.subr.mxu0 0.0
    %v643 = vand.u32 %v90, 4294901760
    %644 = vmatpush1.msra.mxu0 %v643
    %645 = vmatprep.subr.mxu0 0.0
    %v646 = vand.u32 %v91, 4294901760
    %647 = vmatpush1.msra.mxu0 %v646
    %648 = vmatprep.subr.mxu0 0.0
    %v649 = vand.u32 %v92, 4294901760
    %650 = vmatpush1.msra.mxu0 %v649
    %651 = vmatprep.subr.mxu0 0.0
    %v652 = vand.u32 %v93, 4294901760
    %653 = vmatpush1.msra.mxu0 %v652
    %654 = vmatprep.subr.mxu0 0.0
    %v655 = vand.u32 %v94, 4294901760
    %656 = vmatpush1.msra.mxu0 %v655
    %657 = vmatprep.subr.mxu0 0.0
    %v658 = vand.u32 %v95, 4294901760
    %659 = vmatpush1.msra.mxu0 %v658
    %660 = vmatprep.subr.mxu0 0.0
    %v661 = vand.u32 %v96, 4294901760
    %662 = vmatpush1.msra.mxu0 %v661
    %663 = vmatprep.subr.mxu0 0.0
    %v664 = vand.u32 %v97, 4294901760
    %665 = vmatpush1.msra.mxu0 %v664
    %666 = vmatprep.subr.mxu0 0.0
    %v667 = vand.u32 %v98, 4294901760
    %668 = vmatpush1.msra.mxu0 %v667
    %669 = vmatprep.subr.mxu0 0.0
    %v670 = vand.u32 %v99, 4294901760
    %671 = vmatpush1.msra.mxu0 %v670
    %672 = vmatprep.subr.mxu0 0.0
    %v673 = vand.u32 %v100, 4294901760
    %674 = vmatpush1.msra.mxu0 %v673
    %675 = vmatprep.subr.mxu0 0.0
    %v676 = vand.u32 %v101, 4294901760
    %677 = vmatpush1.msra.mxu0 %v676
    %678 = vmatprep.subr.mxu0 0.0
    %v679 = vand.u32 %v102, 4294901760
    %680 = vmatpush1.msra.mxu0 %v679
    %v681 = vand.u32 %v57, 4294901760
    %v682 = vsub.f32 %v57, %v681
    %v683 = vand.u32 %v682, 4294901760
    %684 = vmatprep.mubr.f32.mxu0 %v683
    %v685 = vand.u32 %v56, 4294901760
    %v686 = vsub.f32 %v56, %v685
    %v687 = vand.u32 %v686, 4294901760
    %688 = vmatmul.mubr.f32.gmra.mrb[0].mxu0 %v687
    %v689 = vpop.f32.mrb[0].mxu0
    %v690 = vadd.f32 %v582, %v689
    %v691 = vpop.f32.mrb[0].mxu0
    %692 = vdwg.mxu0
    %693 = vmatprep.subr.mxu0 0.0
    %v694 = vand.u32 %v71, 4294901760
    %v695 = vsub.f32 %v71, %v694
    %v696 = vand.u32 %v695, 4294901760
    %697 = vmatpush1.msra.mxu0 %v696
    %698 = vmatprep.subr.mxu0 0.0
    %v699 = vand.u32 %v72, 4294901760
    %v700 = vsub.f32 %v72, %v699
    %v701 = vand.u32 %v700, 4294901760
    %702 = vmatpush1.msra.mxu0 %v701
    %703 = vmatprep.subr.mxu0 0.0
    %v704 = vand.u32 %v73, 4294901760
    %v705 = vsub.f32 %v73, %v704
    %v706 = vand.u32 %v705, 4294901760
    %707 = vmatpush1.msra.mxu0 %v706
    %708 = vmatprep.subr.mxu0 0.0
    %v709 = vand.u32 %v74, 4294901760
    %v710 = vsub.f32 %v74, %v709
    %v711 = vand.u32 %v710, 4294901760
    %712 = vmatpush1.msra.mxu0 %v711
    %713 = vmatprep.subr.mxu0 0.0
    %v714 = vand.u32 %v75, 4294901760
    %v715 = vsub.f32 %v75, %v714
    %v716 = vand.u32 %v715, 4294901760
    %717 = vmatpush1.msra.mxu0 %v716
    %718 = vmatprep.subr.mxu0 0.0
    %v719 = vand.u32 %v76, 4294901760
    %v720 = vsub.f32 %v76, %v719
    %v721 = vand.u32 %v720, 4294901760
    %722 = vmatpush1.msra.mxu0 %v721
    %723 = vmatprep.subr.mxu0 0.0
    %v724 = vand.u32 %v77, 4294901760
    %v725 = vsub.f32 %v77, %v724
    %v726 = vand.u32 %v725, 4294901760
    %727 = vmatpush1.msra.mxu0 %v726
    %728 = vmatprep.subr.mxu0 0.0
    %v729 = vand.u32 %v78, 4294901760
    %v730 = vsub.f32 %v78, %v729
    %v731 = vand.u32 %v730, 4294901760
    %732 = vmatpush1.msra.mxu0 %v731
    %733 = vmatprep.subr.mxu0 0.0
    %v734 = vand.u32 %v79, 4294901760
    %v735 = vsub.f32 %v79, %v734
    %v736 = vand.u32 %v735, 4294901760
    %737 = vmatpush1.msra.mxu0 %v736
    %738 = vmatprep.subr.mxu0 0.0
    %v739 = vand.u32 %v80, 4294901760
    %v740 = vsub.f32 %v80, %v739
    %v741 = vand.u32 %v740, 4294901760
    %742 = vmatpush1.msra.mxu0 %v741
    %743 = vmatprep.subr.mxu0 0.0
    %v744 = vand.u32 %v81, 4294901760
    %v745 = vsub.f32 %v81, %v744
    %v746 = vand.u32 %v745, 4294901760
    %747 = vmatpush1.msra.mxu0 %v746
    %748 = vmatprep.subr.mxu0 0.0
    %v749 = vand.u32 %v82, 4294901760
    %v750 = vsub.f32 %v82, %v749
    %v751 = vand.u32 %v750, 4294901760
    %752 = vmatpush1.msra.mxu0 %v751
    %753 = vmatprep.subr.mxu0 0.0
    %v754 = vand.u32 %v83, 4294901760
    %v755 = vsub.f32 %v83, %v754
    %v756 = vand.u32 %v755, 4294901760
    %757 = vmatpush1.msra.mxu0 %v756
    %758 = vmatprep.subr.mxu0 0.0
    %v759 = vand.u32 %v84, 4294901760
    %v760 = vsub.f32 %v84, %v759
    %v761 = vand.u32 %v760, 4294901760
    %762 = vmatpush1.msra.mxu0 %v761
    %763 = vmatprep.subr.mxu0 0.0
    %v764 = vand.u32 %v85, 4294901760
    %v765 = vsub.f32 %v85, %v764
    %v766 = vand.u32 %v765, 4294901760
    %767 = vmatpush1.msra.mxu0 %v766
    %768 = vmatprep.subr.mxu0 0.0
    %v769 = vand.u32 %v86, 4294901760
    %v770 = vsub.f32 %v86, %v769
    %v771 = vand.u32 %v770, 4294901760
    %772 = vmatpush1.msra.mxu0 %v771
    %773 = vmatprep.subr.mxu0 0.0
    %v774 = vand.u32 %v87, 4294901760
    %v775 = vsub.f32 %v87, %v774
    %v776 = vand.u32 %v775, 4294901760
    %777 = vmatpush1.msra.mxu0 %v776
    %778 = vmatprep.subr.mxu0 0.0
    %v779 = vand.u32 %v88, 4294901760
    %v780 = vsub.f32 %v88, %v779
    %v781 = vand.u32 %v780, 4294901760
    %782 = vmatpush1.msra.mxu0 %v781
    %783 = vmatprep.subr.mxu0 0.0
    %v784 = vand.u32 %v89, 4294901760
    %v785 = vsub.f32 %v89, %v784
    %v786 = vand.u32 %v785, 4294901760
    %787 = vmatpush1.msra.mxu0 %v786
    %788 = vmatprep.subr.mxu0 0.0
    %v789 = vand.u32 %v90, 4294901760
    %v790 = vsub.f32 %v90, %v789
    %v791 = vand.u32 %v790, 4294901760
    %792 = vmatpush1.msra.mxu0 %v791
    %793 = vmatprep.subr.mxu0 0.0
    %v794 = vand.u32 %v91, 4294901760
    %v795 = vsub.f32 %v91, %v794
    %v796 = vand.u32 %v795, 4294901760
    %797 = vmatpush1.msra.mxu0 %v796
    %798 = vmatprep.subr.mxu0 0.0
    %v799 = vand.u32 %v92, 4294901760
    %v800 = vsub.f32 %v92, %v799
    %v801 = vand.u32 %v800, 4294901760
    %802 = vmatpush1.msra.mxu0 %v801
    %803 = vmatprep.subr.mxu0 0.0
    %v804 = vand.u32 %v93, 4294901760
    %v805 = vsub.f32 %v93, %v804
    %v806 = vand.u32 %v805, 4294901760
    %807 = vmatpush1.msra.mxu0 %v806
    %808 = vmatprep.subr.mxu0 0.0
    %v809 = vand.u32 %v94, 4294901760
    %v810 = vsub.f32 %v94, %v809
    %v811 = vand.u32 %v810, 4294901760
    %812 = vmatpush1.msra.mxu0 %v811
    %813 = vmatprep.subr.mxu0 0.0
    %v814 = vand.u32 %v95, 4294901760
    %v815 = vsub.f32 %v95, %v814
    %v816 = vand.u32 %v815, 4294901760
    %817 = vmatpush1.msra.mxu0 %v816
    %818 = vmatprep.subr.mxu0 0.0
    %v819 = vand.u32 %v96, 4294901760
    %v820 = vsub.f32 %v96, %v819
    %v821 = vand.u32 %v820, 4294901760
    %822 = vmatpush1.msra.mxu0 %v821
    %823 = vmatprep.subr.mxu0 0.0
    %v824 = vand.u32 %v97, 4294901760
    %v825 = vsub.f32 %v97, %v824
    %v826 = vand.u32 %v825, 4294901760
    %827 = vmatpush1.msra.mxu0 %v826
    %828 = vmatprep.subr.mxu0 0.0
    %v829 = vand.u32 %v98, 4294901760
    %v830 = vsub.f32 %v98, %v829
    %v831 = vand.u32 %v830, 4294901760
    %832 = vmatpush1.msra.mxu0 %v831
    %833 = vmatprep.subr.mxu0 0.0
    %v834 = vand.u32 %v99, 4294901760
    %v835 = vsub.f32 %v99, %v834
    %v836 = vand.u32 %v835, 4294901760
    %837 = vmatpush1.msra.mxu0 %v836
    %838 = vmatprep.subr.mxu0 0.0
    %v839 = vand.u32 %v100, 4294901760
    %v840 = vsub.f32 %v100, %v839
    %v841 = vand.u32 %v840, 4294901760
    %842 = vmatpush1.msra.mxu0 %v841
    %843 = vmatprep.subr.mxu0 0.0
    %v844 = vand.u32 %v101, 4294901760
    %v845 = vsub.f32 %v101, %v844
    %v846 = vand.u32 %v845, 4294901760
    %847 = vmatpush1.msra.mxu0 %v846
    %848 = vmatprep.subr.mxu0 0.0
    %v849 = vand.u32 %v102, 4294901760
    %v850 = vsub.f32 %v102, %v849
    %v851 = vand.u32 %v850, 4294901760
    %852 = vmatpush1.msra.mxu0 %v851
    %v853 = vand.u32 %v57, 4294901760
    %854 = vmatprep.mubr.f32.mxu0 %v853
    %v855 = vand.u32 %v56, 4294901760
    %856 = vmatmul.mubr.f32.gmra.mrb[0].mxu0 %v855
    %v857 = vpop.f32.mrb[0].mxu0
    %v858 = vadd.f32 %v690, %v857
    %v859 = vpop.f32.mrb[0].mxu0
    %860 = vdwg.mxu0
    %861 = vmatprep.subr.mxu0 0.0
    %v862 = vand.u32 %v71, 4294901760
    %863 = vmatpush1.msra.mxu0 %v862
    %864 = vmatprep.subr.mxu0 0.0
    %v865 = vand.u32 %v72, 4294901760
    %866 = vmatpush1.msra.mxu0 %v865
    %867 = vmatprep.subr.mxu0 0.0
    %v868 = vand.u32 %v73, 4294901760
    %869 = vmatpush1.msra.mxu0 %v868
    %870 = vmatprep.subr.mxu0 0.0
    %v871 = vand.u32 %v74, 4294901760
    %872 = vmatpush1.msra.mxu0 %v871
    %873 = vmatprep.subr.mxu0 0.0
    %v874 = vand.u32 %v75, 4294901760
    %875 = vmatpush1.msra.mxu0 %v874
    %876 = vmatprep.subr.mxu0 0.0
    %v877 = vand.u32 %v76, 4294901760
    %878 = vmatpush1.msra.mxu0 %v877
    %879 = vmatprep.subr.mxu0 0.0
    %v880 = vand.u32 %v77, 4294901760
    %881 = vmatpush1.msra.mxu0 %v880
    %882 = vmatprep.subr.mxu0 0.0
    %v883 = vand.u32 %v78, 4294901760
    %884 = vmatpush1.msra.mxu0 %v883
    %885 = vmatprep.subr.mxu0 0.0
    %v886 = vand.u32 %v79, 4294901760
    %887 = vmatpush1.msra.mxu0 %v886
    %888 = vmatprep.subr.mxu0 0.0
    %v889 = vand.u32 %v80, 4294901760
    %890 = vmatpush1.msra.mxu0 %v889
    %891 = vmatprep.subr.mxu0 0.0
    %v892 = vand.u32 %v81, 4294901760
    %893 = vmatpush1.msra.mxu0 %v892
    %894 = vmatprep.subr.mxu0 0.0
    %v895 = vand.u32 %v82, 4294901760
    %896 = vmatpush1.msra.mxu0 %v895
    %897 = vmatprep.subr.mxu0 0.0
    %v898 = vand.u32 %v83, 4294901760
    %899 = vmatpush1.msra.mxu0 %v898
    %900 = vmatprep.subr.mxu0 0.0
    %v901 = vand.u32 %v84, 4294901760
    %902 = vmatpush1.msra.mxu0 %v901
    %903 = vmatprep.subr.mxu0 0.0
    %v904 = vand.u32 %v85, 4294901760
    %905 = vmatpush1.msra.mxu0 %v904
    %906 = vmatprep.subr.mxu0 0.0
    %v907 = vand.u32 %v86, 4294901760
    %908 = vmatpush1.msra.mxu0 %v907
    %909 = vmatprep.subr.mxu0 0.0
    %v910 = vand.u32 %v87, 4294901760
    %911 = vmatpush1.msra.mxu0 %v910
    %912 = vmatprep.subr.mxu0 0.0
    %v913 = vand.u32 %v88, 4294901760
    %914 = vmatpush1.msra.mxu0 %v913
    %915 = vmatprep.subr.mxu0 0.0
    %v916 = vand.u32 %v89, 4294901760
    %917 = vmatpush1.msra.mxu0 %v916
    %918 = vmatprep.subr.mxu0 0.0
    %v919 = vand.u32 %v90, 4294901760
    %920 = vmatpush1.msra.mxu0 %v919
    %921 = vmatprep.subr.mxu0 0.0
    %v922 = vand.u32 %v91, 4294901760
    %923 = vmatpush1.msra.mxu0 %v922
    %924 = vmatprep.subr.mxu0 0.0
    %v925 = vand.u32 %v92, 4294901760
    %926 = vmatpush1.msra.mxu0 %v925
    %927 = vmatprep.subr.mxu0 0.0
    %v928 = vand.u32 %v93, 4294901760
    %929 = vmatpush1.msra.mxu0 %v928
    %930 = vmatprep.subr.mxu0 0.0
    %v931 = vand.u32 %v94, 4294901760
    %932 = vmatpush1.msra.mxu0 %v931
    %933 = vmatprep.subr.mxu0 0.0
    %v934 = vand.u32 %v95, 4294901760
    %935 = vmatpush1.msra.mxu0 %v934
    %936 = vmatprep.subr.mxu0 0.0
    %v937 = vand.u32 %v96, 4294901760
    %938 = vmatpush1.msra.mxu0 %v937
    %939 = vmatprep.subr.mxu0 0.0
    %v940 = vand.u32 %v97, 4294901760
    %941 = vmatpush1.msra.mxu0 %v940
    %942 = vmatprep.subr.mxu0 0.0
    %v943 = vand.u32 %v98, 4294901760
    %944 = vmatpush1.msra.mxu0 %v943
    %945 = vmatprep.subr.mxu0 0.0
    %v946 = vand.u32 %v99, 4294901760
    %947 = vmatpush1.msra.mxu0 %v946
    %948 = vmatprep.subr.mxu0 0.0
    %v949 = vand.u32 %v100, 4294901760
    %950 = vmatpush1.msra.mxu0 %v949
    %951 = vmatprep.subr.mxu0 0.0
    %v952 = vand.u32 %v101, 4294901760
    %953 = vmatpush1.msra.mxu0 %v952
    %954 = vmatprep.subr.mxu0 0.0
    %v955 = vand.u32 %v102, 4294901760
    %956 = vmatpush1.msra.mxu0 %v955
    %v957 = vand.u32 %v57, 4294901760
    %958 = vmatprep.mubr.f32.mxu0 %v957
    %v959 = vand.u32 %v56, 4294901760
    %960 = vmatmul.mubr.f32.gmra.mrb[0].mxu0 %v959
    %v961 = vpop.f32.mrb[0].mxu0
    %v962 = vadd.f32 %v858, %v961
    %v963 = vpop.f32.mrb[0].mxu0
    %964 = vdwg.mxu0
    %v965 = vand.u32 2147483647, %v962
    %966 = vadd.xlane.f32.xlu0 %v965
    %v967 = vpop.xlane.xlu0 %966
    %v968 = vrot.slane %v967, 4
    %v969 = vadd.f32 %v967, %v968
    %v970 = vrot.slane %v969, 2
    %v971 = vadd.f32 %v969, %v970
    %v972 = vrot.slane %v971, 1
    %v973 = vadd.f32 %v971, %v972
    %s974 = vtos %v973
    %s975 = sadd.f32 %s70, %s974
    %v976 = vstv %s975
    %977 = vst [vmem:[#allocation8] sm:$0xff] %v976
    // Predicated region
    $region26: #{tpu_custom_call.1} parent=1 // pred_check
      _
    $region27: #{tpu_custom_call.1} parent=1 // pred_check_branch
      %979 = sbr.rel (0) target = $region29
    $region28: #{tpu_custom_call.1} parent=1 // pred_region
      %s981 = ssub.s32 128, 128
      %982 = vsyncadd [#allocation4], %s981
      %s984 = sshll.u32 [#allocation8], 4
      %s985 = int_to_ptr.vmem [resolvable:$true] %s984
      %987 = dma.vmem_to_hbm [thread:$0]  %s985, 128, %s3, [#allocation4]
    $region29: #{tpu_custom_call.1} parent=1 // pred_fallthru
      _
    // Predicated region
    $region30: #{tpu_custom_call.1} parent=1 // pred_check
      _
    $region31: #{tpu_custom_call.1} parent=1 // pred_check_branch
      %989 = sbr.rel (0) target = $region33
    $region32: #{tpu_custom_call.1} parent=1 // pred_region
      %990 = dma.done [#allocation4], 128
    $region33: #{tpu_custom_call.1} parent=1 // pred_fallthru
      _
    %991 = vsyncpa [#allocation3], 1
    %992 = vsyncpa [#allocation6], 1
    %993 = vsyncpa [#allocation4], 1

</llo_original>
